<compile_context>
chip_gen: v7x
topology: tpu7x:2x2x1
jax: 0.10.0
libtpu: 0.0.40
codegen_flags: <defaults>
</compile_context>

<pallas_src>
import functools

import jax
import jax.numpy as jnp
import numpy as np
from jax.experimental import pallas as pl
from jax.experimental.pallas import tpu as pltpu


def _unpool_kernel(x_ref, w_ref, o_ref, *, s):
    # x_ref : (B, TH, W)        input plane rows for B (n, c) planes
    # w_ref : (B, s, W*s)       lane-expanded taps, w_ref[p, a, j*s+b] = W[c(p), 0, a, b]
    # o_ref : (B, TH, s*W*s)    contiguous alias of the (B, TH*s, W*s) output rows
    x = x_ref[...]                                # (B, TH, W)
    w = w_ref[...]                                # (B, s, Ws), f32

    # Column interleave on the XLU (no MXU): xr[p, i, j*s+b] = x[p, i, j].
    xr = jnp.repeat(x, s, axis=-1)                # (B, TH, Ws)

    # One scaled copy per kernel row `a`, concatenated along lanes so the
    # whole block goes out as a single dense full-width store.
    # out[p, i, a*Ws + j*s + b] = x[p, i, j] * W[c(p), 0, a, b]
    pieces = [xr * w[:, a:a + 1, :] for a in range(s)]   # each (B, TH, Ws), f32
    o_ref[...] = jnp.concatenate(pieces, axis=-1).astype(o_ref.dtype)


def _choose_tiles(NC, H, W, s, itemsize):
    """Pick (B planes per step, TH rows per step)."""
    target_out = 2 << 20          # aim for ~2 MiB output DMA per grid step
    budget = 20 << 20             # double-buffered VMEM budget (portable to v7x)

    def footprint(B, TH):
        in_b = B * TH * W * itemsize
        out_b = B * TH * s * s * W * itemsize
        wr_b = B * s * s * W * 4
        return 2 * (in_b + out_b + wr_b)   # x2 for double buffering

    def out_bytes(B, TH):
        return B * TH * s * s * W * itemsize

    def divisors(n):
        return [d for d in range(1, n + 1) if n % d == 0]

    if footprint(1, H) <= budget:
        # Whole planes fit: batch planes per step until the output DMA is big.
        B, TH = 1, H
        for d in divisors(NC):
            if footprint(d, H) > budget:
                break
            B = d
            if out_bytes(d, H) >= target_out:
                break
    else:
        # A single plane is too large: one plane per step, tile its rows.
        B = 1
        TH = 8 if H % 8 == 0 else H
        for d in divisors(H):
            if (d % 8 == 0 or d == H) and footprint(1, d) <= budget:
                TH = max(TH, d)
        # TODO(synk): if even an 8-row tile overflows the budget (gigantic W),
        # a W-tile grid axis would be needed; not expected for this module.

    # Keep >= 2 grid steps when possible so v7x's two TensorCores both work.
    if (NC // B) * (H // TH) < 2 and NC >= 2:
        smaller = [d for d in divisors(NC) if d < B]
        if smaller:
            B = max(smaller)
    return B, TH


@functools.partial(jax.jit, static_argnums=(2,))
def unpool(x, weights, stride):
    """Equivalent of Unpool.forward: conv_transpose2d(x, weights, stride, groups=C)."""
    N, C, H, W = x.shape
    s = int(stride)
    # Non-overlapping-tap assumption: kernel_size == stride.
    assert weights.shape == (C, 1, s, s), (weights.shape, (C, 1, s, s))

    Hs, Ws = H * s, W * s
    NC = N * C

    # Lane-expanded per-plane tap rows: wrow[n*C + c, a, j*s + b] = weights[c, 0, a, b].
    w_ss = weights.reshape(C, s, s).astype(jnp.float32)
    wrow_c = jnp.broadcast_to(w_ss[:, :, None, :], (C, s, W, s)).reshape(C, s, Ws)
    wrow = jnp.broadcast_to(wrow_c[None], (N, C, s, Ws)).reshape(NC, s, Ws)

    # Fuse N and C into one axis; the output is produced in the contiguous
    # (NC, H, s*Ws) view of (NC, Hs, Ws), so both reshapes are no-ops.
    x3 = x.reshape(NC, H, W)

    itemsize = jnp.dtype(x.dtype).itemsize
    B, TH = _choose_tiles(NC, H, W, s, itemsize)
    grid = (NC // B, H // TH)

    # Note: for very small planes (e.g. W=16, s=2) the output lane width
    # s*Ws < 128, so stores are masked; realistic feature-map widths give
    # a >=128-multiple lane-dense store.
    out3 = pl.pallas_call(
        functools.partial(_unpool_kernel, s=s),
        out_shape=jax.ShapeDtypeStruct((NC, H, s * Ws), x.dtype),
        grid=grid,
        in_specs=[
            pl.BlockSpec((B, TH, W), lambda g, h: (g, h, 0)),      # input rows
            pl.BlockSpec((B, s, Ws), lambda g, h: (g, 0, 0)),      # per-plane taps
        ],
        out_specs=pl.BlockSpec((B, TH, s * Ws), lambda g, h: (g, h, 0)),
        compiler_params=pltpu.CompilerParams(
            dimension_semantics=("parallel", "parallel"),
            vmem_limit_bytes=32 * 1024 * 1024,
        ),
    )(x3, wrow)

    # Contiguous no-op: (NC, H, s*Ws) -> (N, C, Hs, Ws).
    return out3.reshape(N, C, Hs, Ws)


def unpool_reference(x, weights, stride):
    """Plain-JAX reference of conv_transpose2d(x, W, stride=s, groups=C)."""
    N, C, H, W = x.shape
    s = stride
    out = jnp.zeros((N, C, H * s, W * s), dtype=x.dtype)
    for a in range(s):
        for b in range(s):
            tap = x * weights[:, 0, a, b][None, :, None, None]
            out = out.at[:, :, a::s, b::s].set(tap)
    return out


if __name__ == "__main__":
    key = jax.random.PRNGKey(0)
    kx, kw = jax.random.split(key)

    N, C, H, W = 2, 4, 16, 16
    stride = 2

    x = jax.random.normal(kx, (N, C, H, W), dtype=jnp.float32)

    # Deterministic parameter init per Unpool.__init__:
    # zeros of shape (C, 1, stride, stride) with [:, :, 0, 0] = 1
    weights = jnp.zeros((C, 1, stride, stride), dtype=jnp.float32)
    weights = weights.at[:, :, 0, 0].set(1.0)

    out = jax.block_until_ready(unpool(x, weights, stride))
    ref = unpool_reference(x, weights, stride)

    assert out.shape == (N, C, H * stride, W * stride), out.shape
    np.testing.assert_allclose(np.asarray(out), np.asarray(ref), rtol=1e-5, atol=1e-5)

    # Also exercise the general (non-init) weight path of the grouped transpose conv.
    weights_rnd = jax.random.normal(kw, (C, 1, stride, stride), dtype=jnp.float32)
    out_rnd = jax.block_until_ready(unpool(x, weights_rnd, stride))
    ref_rnd = unpool_reference(x, weights_rnd, stride)
    np.testing.assert_allclose(np.asarray(out_rnd), np.asarray(ref_rnd), rtol=1e-5, atol=1e-5)

    print("KERNEL_OK")
</pallas_src>

<mosaic_0001>
module attributes {stable_mosaic.version = 11 : i64} {
  func.func @_unpool_kernel(%arg0: i32, %arg1: i32, %arg2: memref<4x16x16xf32, #tpu.memory_space<vmem>>, %arg3: memref<4x2x32xf32, #tpu.memory_space<vmem>>, %arg4: memref<4x16x64xf32, #tpu.memory_space<vmem>>) attributes {dimension_semantics = [#tpu.dimension_semantics<parallel>, #tpu.dimension_semantics<parallel>], iteration_bounds = array<i64: 2, 1>, scalar_prefetch = 0 : i64, scratch_operands = 0 : i64, tpu.core_type = #tpu.core_type<tc>, window_params = [{transform_indices = @transform_0, window_bounds = array<i64: 4, 16, 16>}, {transform_indices = @transform_1, window_bounds = array<i64: 4, 2, 32>}, {transform_indices = @transform_2, window_bounds = array<i64: 4, 16, 64>}]} {
    %c0 = arith.constant 0 : index
    %c0_0 = arith.constant 0 : index
    %c0_1 = arith.constant 0 : index
    %0 = vector.load %arg2[%c0, %c0_0, %c0_1] : memref<4x16x16xf32, #tpu.memory_space<vmem>>, vector<4x16x16xf32>
    %c0_2 = arith.constant 0 : index
    %c0_3 = arith.constant 0 : index
    %c0_4 = arith.constant 0 : index
    %1 = vector.load %arg3[%c0_2, %c0_3, %c0_4] : memref<4x2x32xf32, #tpu.memory_space<vmem>>, vector<4x2x32xf32>
    %2 = vector.shape_cast %0 : vector<4x16x16xf32> to vector<4x16x16x1xf32>
    %3 = vector.broadcast %2 : vector<4x16x16x1xf32> to vector<4x16x16x2xf32>
    %4 = vector.shape_cast %3 : vector<4x16x16x2xf32> to vector<4x16x32xf32>
    %5 = vector.extract_strided_slice %1 {offsets = [0, 0, 0], sizes = [4, 1, 32], strides = [1, 1, 1]} : vector<4x2x32xf32> to vector<4x1x32xf32>
    %6 = vector.broadcast %5 : vector<4x1x32xf32> to vector<4x16x32xf32>
    %7 = arith.mulf %4, %6 : vector<4x16x32xf32>
    %8 = vector.extract_strided_slice %1 {offsets = [0, 1, 0], sizes = [4, 1, 32], strides = [1, 1, 1]} : vector<4x2x32xf32> to vector<4x1x32xf32>
    %9 = vector.broadcast %8 : vector<4x1x32xf32> to vector<4x16x32xf32>
    %10 = arith.mulf %4, %9 : vector<4x16x32xf32>
    %11 = tpu.concatenate %7, %10 in 2 : vector<4x16x32xf32>, vector<4x16x32xf32> -> vector<4x16x64xf32>
    %c0_5 = arith.constant 0 : index
    %c0_6 = arith.constant 0 : index
    %c0_7 = arith.constant 0 : index
    %12 = vector.load %arg4[%c0_5, %c0_6, %c0_7] : memref<4x16x64xf32, #tpu.memory_space<vmem>>, vector<4x16x64xf32>
    tpu.vector_store %arg4[%c0_5, %c0_6, %c0_7], %11 {strides = array<i32>} : memref<4x16x64xf32, #tpu.memory_space<vmem>>, vector<4x16x64xf32>,
    return
  }
  func.func @transform_0(%arg0: i32, %arg1: i32) -> (i32, i32, i32) {
    %c0_i32 = arith.constant 0 : i32
    %c0_i32_0 = arith.constant 0 : i32
    return %arg0, %arg1, %c0_i32 : i32, i32, i32
  }
  func.func @transform_1(%arg0: i32, %arg1: i32) -> (i32, i32, i32) {
    %c0_i32 = arith.constant 0 : i32
    %c0_i32_0 = arith.constant 0 : i32
    %c0_i32_1 = arith.constant 0 : i32
    return %arg0, %c0_i32, %c0_i32_0 : i32, i32, i32
  }
  func.func @transform_2(%arg0: i32, %arg1: i32) -> (i32, i32, i32) {
    %c0_i32 = arith.constant 0 : i32
    %c0_i32_0 = arith.constant 0 : i32
    return %arg0, %arg1, %c0_i32 : i32, i32, i32
  }
}

</mosaic_0001>

<llo_original>
// kernel: unpool.1
$region0: #{unpool.1}
  #allocation0 [shape = 'u32[]', space=smem, size = 0x4, offset = 0x4, fixed_abs, tag = 'smem constant byte address 0x4 - core index']
  #allocation1 [shape = 'u32[144,128]{1,0:T(1,128)}', space=vmem, size = 0x12000, scoped, tag = 'internal scratch']
  %s0 = inlined_call_operand.vmem [shape: f32[8,16,16], index: 0, kind: input, shape index: {}]
  %s1 = inlined_call_operand.vmem [shape: f32[8,2,32], index: 1, kind: input, shape index: {}]
  %s2 = inlined_call_operand.vmem [shape: f32[8,16,64], index: 2, kind: output, shape index: {}]
  %s3 = sld [smem:[#allocation0]]
  $region41: #{unpool.1} parent=0
    _
  %s5 = ssub.s32 1, %s3
  %s6 = scalar_select 0, %s5, %s3
  loop: start=0, step=1, limit=4
  $region2: #{unpool.1} parent=0 // loop_pre_header
    _
  $region3: #{unpool.1} parent=0 // loop_header
    %s8 = sphi 0, %s12
    %p9 = scmp.ge.s32.totalorder %s8, 4
    %s15 = sphi 0, %s27
    %s16 = sphi 0, %s23
    %s17 = sphi 0, %s15
    %s18 = sphi 0, %s16
    %s19 = sphi 0, %s17
    %s20 = sphi 0, %s18
    %s32 = sphi 0, %s34
    %s35 = sphi 0, %s32
    %s36 = sphi 0, %s35
    %s52 = sphi 0, %s36
    %s58 = sphi 0, %s60
    %s61 = sphi 0, %s58
    %s62 = sphi 0, %s61
    %s78 = sphi 0, %s62
    %s86 = sphi 0, %s88
    %s89 = sphi 0, %s86
    %s90 = sphi 0, %s89
    %s106 = sphi 0, %s90
  $region4: #{unpool.1} parent=0 // loop_header_branch
    %11 = sbr.rel (%p9) target = $region8
  $region5: #{unpool.1} parent=0 // loop_body
    %s13 = ssub.s32 %s8, 1
    %s14 = ssub.s32 %s8, 2
    %s21 = sadd.s32 1, %s16
    %p22 = scmp.ge.s32.totalorder %s21, 1
    %s23 = scalar_select %p22, 0, %s21
    %s24 = sadd.s32 1, %s15
    %s25 = scalar_select %p22, %s24, %s15
    %p26 = scmp.ge.s32.totalorder %s25, 2
    %s27 = scalar_select %p26, 0, %s25
    %s28 = ssub.s32 %s15, %s27
    %s29 = ssub.s32 %s16, %s23
    %s30 = sor.u32 %s28, %s29
    %p31 = scmp.eq.s32.totalorder %s30, 0
    %s33 = sadd.s32 %s32, 1
    %s34 = scalar_select %p31, %s32, %s33
    %p37 = pneg %p31
    %p38 = scmp.eq.s32.totalorder %s8, 1
    %p39 = por %p37, %p38
    %p40 = scmp.ne.s32.totalorder %s32, %s35
    %p41 = scmp.eq.s32.totalorder %s8, 0
    %p42 = por %p40, %p41
    %p43 = scmp.ne.s32.totalorder %s32, %s35
    %p44 = scmp.eq.s32.totalorder %s13, 1
    %p45 = por %p43, %p44
    %p46 = scmp.ne.s32.totalorder %s35, %s36
    %p47 = scmp.eq.s32.totalorder %s13, 0
    %p48 = por %p46, %p47
    %p49 = scmp.ne.s32.totalorder %s35, %s36
    %p50 = scmp.eq.s32.totalorder %s14, 1
    %p51 = por %p49, %p50
    %p53 = scmp.ne.s32.totalorder %s36, %s52
    %p54 = scmp.eq.s32.totalorder %s14, 0
    %p55 = por %p53, %p54
    %s56 = ssub.s32 %s15, %s27
    %p57 = scmp.eq.s32.totalorder %s56, 0
    %s59 = sadd.s32 %s58, 1
    %s60 = scalar_select %p57, %s58, %s59
    %p63 = pneg %p57
    %p64 = scmp.eq.s32.totalorder %s8, 1
    %p65 = por %p63, %p64
    %p66 = scmp.ne.s32.totalorder %s58, %s61
    %p67 = scmp.eq.s32.totalorder %s8, 0
    %p68 = por %p66, %p67
    %p69 = scmp.ne.s32.totalorder %s58, %s61
    %p70 = scmp.eq.s32.totalorder %s13, 1
    %p71 = por %p69, %p70
    %p72 = scmp.ne.s32.totalorder %s61, %s62
    %p73 = scmp.eq.s32.totalorder %s13, 0
    %p74 = por %p72, %p73
    %p75 = scmp.ne.s32.totalorder %s61, %s62
    %p76 = scmp.eq.s32.totalorder %s14, 1
    %p77 = por %p75, %p76
    %p79 = scmp.ne.s32.totalorder %s62, %s78
    %p80 = scmp.eq.s32.totalorder %s14, 0
    %p81 = por %p79, %p80
    %s82 = ssub.s32 %s15, %s27
    %s83 = ssub.s32 %s16, %s23
    %s84 = sor.u32 %s82, %s83
    %p85 = scmp.eq.s32.totalorder %s84, 0
    %s87 = sadd.s32 %s86, 1
    %s88 = scalar_select %p85, %s86, %s87
    %p91 = pneg %p85
    %p92 = scmp.eq.s32.totalorder %s8, 1
    %p93 = por %p91, %p92
    %p94 = scmp.ne.s32.totalorder %s86, %s89
    %p95 = scmp.eq.s32.totalorder %s8, 0
    %p96 = por %p94, %p95
    %p97 = scmp.ne.s32.totalorder %s86, %s89
    %p98 = scmp.eq.s32.totalorder %s13, 1
    %p99 = por %p97, %p98
    %p100 = scmp.ne.s32.totalorder %s89, %s90
    %p101 = scmp.eq.s32.totalorder %s13, 0
    %p102 = por %p100, %p101
    %p103 = scmp.ne.s32.totalorder %s89, %s90
    %p104 = scmp.eq.s32.totalorder %s14, 1
    %p105 = por %p103, %p104
    %p107 = scmp.ne.s32.totalorder %s90, %s106
    %p108 = scmp.eq.s32.totalorder %s14, 0
    %p109 = por %p107, %p108
    %p110 = scmp.le.s32.totalorder 1, %s8
    %p111 = scmp.lt.s32.totalorder %s8, 3
    %p112 = pnand %p110, %p111
    %p113 = pneg %p112
    // Predicated region
    $region9: #{unpool.1} parent=5 // pred_check
      _
    $region10: #{unpool.1} parent=5 // pred_check_branch
      %115 = sbr.rel (%p112) target = $region12
    $region11: #{unpool.1} parent=5 // pred_region
      %s116 = ssub.s32 %s8, 1
    $region12: #{unpool.1} parent=5 // pred_fallthru
      _
    %p117 = scmp.lt.s32.totalorder %s8, 2
    // Predicated region
    $region13: #{unpool.1} parent=5 // pred_check
      %p118 = pneg %p117
    $region14: #{unpool.1} parent=5 // pred_check_branch
      %120 = sbr.rel (%p118) target = $region16
    $region15: #{unpool.1} parent=5 // pred_region
      // Predicated region
      $region17: #{unpool.1} parent=15 // pred_check
        %p121 = pneg %p42
      $region18: #{unpool.1} parent=15 // pred_check_branch
        %123 = sbr.rel (%p121) target = $region20
      $region19: #{unpool.1} parent=15 // pred_region
        %s124 = smul.u32 4, %s15
        %s125 = smul.u32 2, %s16
        %p126 = scmp.lt.s32.totalorder %s124, 7
        %s127 = scalar_select %p126, %s124, 7
        %p128 = scmp.lt.s32.totalorder %s125, 1
        %s129 = scalar_select %p128, %s125, 1
        %s130 = smul.addr %s127, 2
        %s131 = sadd.s32 %s129, %s130
        %s132 = smul.addr %s131, 8
        %s133 = scalar_lea.vmem %s0, %s132
        %s134 = smul.u32 4, %s15
        %s135 = smul.u32 2, %s16
      $region20: #{unpool.1} parent=15 // pred_fallthru
        _
      // Predicated region
      $region21: #{unpool.1} parent=15 // pred_check
        %p136 = pneg %p68
      $region22: #{unpool.1} parent=15 // pred_check_branch
        %138 = sbr.rel (%p136) target = $region24
      $region23: #{unpool.1} parent=15 // pred_region
        %s139 = smul.u32 4, %s15
        %p140 = scmp.lt.s32.totalorder %s139, 7
        %s141 = scalar_select %p140, %s139, 7
        %s142 = smul.addr %s141, 2
        %s143 = scalar_lea.vmem %s1, %s142
        %s144 = smul.u32 4, %s15
      $region24: #{unpool.1} parent=15 // pred_fallthru
        _
    $region16: #{unpool.1} parent=5 // pred_fallthru
      _
    %p145 = scmp.le.s32.totalorder 1, %s8
    %p146 = scmp.lt.s32.totalorder %s8, 3
    %p147 = pnand %p145, %p146
    %p148 = pneg %p147
    // Predicated region
    $region25: #{unpool.1} parent=5 // pred_check
      _
    $region26: #{unpool.1} parent=5 // pred_check_branch
      %150 = sbr.rel (%p147) target = $region28
    $region27: #{unpool.1} parent=5 // pred_region
      %s151 = ssub.s32 %s8, 1
      %s152 = smul.u32 4, %s17
      %s153 = smul.u32 2, %s18
      %p154 = scmp.lt.s32.totalorder %s152, 7
      %s155 = scalar_select %p154, %s152, 7
      %p156 = scmp.lt.s32.totalorder %s153, 1
      %s157 = scalar_select %p156, %s153, 1
      %s158 = smul.addr %s155, 2
      %s159 = sadd.s32 %s157, %s158
      %s160 = smul.addr %s159, 8
      %s161 = scalar_lea.vmem %s0, %s160
      %p162 = pneg %p48
      %p163 = pneg %p45
      %s164 = smul.u32 4, %s17
      %p165 = scmp.lt.s32.totalorder %s164, 7
      %s166 = scalar_select %p165, %s164, 7
      %s167 = smul.addr %s166, 2
      %s168 = scalar_lea.vmem %s1, %s167
      %p169 = pneg %p74
      %p170 = pneg %p71
      %p171 = pneg %p102
      %p172 = pneg %p99
      %s173 = smul.u32 4, %s17
      %s174 = smul.u32 2, %s18
      %p175 = scmp.lt.s32.totalorder %s173, 7
      %s176 = scalar_select %p175, %s173, 7
      %p177 = scmp.lt.s32.totalorder %s174, 1
      %s178 = scalar_select %p177, %s174, 1
      %s179 = smul.addr %s176, 2
      %s180 = sadd.s32 %s178, %s179
      %s181 = smul.addr %s180, 8
      %s182 = scalar_lea.vmem %s2, %s181
      %s183 = smul.u32 4, %s17
      %s184 = smul.u32 2, %s18
      %p185 = scmp.lt.s32.totalorder %s183, 7
      %s186 = scalar_select %p185, %s183, 7
      %p187 = scmp.lt.s32.totalorder %s184, 1
      %s188 = scalar_select %p187, %s184, 1
      %s189 = smul.addr %s186, 2
      %s190 = sadd.s32 %s188, %s189
      %s191 = smul.addr %s190, 8
      %s192 = scalar_lea.vmem %s0, %s191
      %s193 = smul.u32 4, %s17
      %s194 = smul.u32 2, %s18
      %s195 = smul.u32 4, %s17
      %p196 = scmp.lt.s32.totalorder %s195, 7
      %s197 = scalar_select %p196, %s195, 7
      %s198 = smul.addr %s197, 2
      %s199 = scalar_lea.vmem %s1, %s198
      %s200 = smul.u32 4, %s17
      %s201 = smul.u32 4, %s17
      %s202 = smul.u32 2, %s18
      %p203 = scmp.lt.s32.totalorder %s201, 7
      %s204 = scalar_select %p203, %s201, 7
      %p205 = scmp.lt.s32.totalorder %s202, 1
      %s206 = scalar_select %p205, %s202, 1
      %s207 = smul.addr %s204, 2
      %s208 = sadd.s32 %s206, %s207
      %s209 = smul.addr %s208, 8
      %s210 = scalar_lea.vmem %s2, %s209
      %s211 = smul.u32 4, %s17
      %s212 = smul.u32 2, %s18
      %v213 = vld [vmem:[%s192] sm:$0xff]
      %v214 = vld [vmem:[%s192 + $0x8] sm:$0xff]
      %v215 = vld [vmem:[%s192 + $0x10] sm:$0xff]
      %v216 = vld [vmem:[%s192 + $0x18] sm:$0xff]
      %v217 = vld [vmem:[%s192 + $0x20] sm:$0xff]
      %v218 = vld [vmem:[%s192 + $0x28] sm:$0xff]
      %v219 = vld [vmem:[%s192 + $0x30] sm:$0xff]
      %v220 = vld [vmem:[%s192 + $0x38] sm:$0xff]
      %v221 = vld [vmem:[%s199] sm:$0x3]
      %v222 = vld [vmem:[%s199 + $0x2] sm:$0x3]
      %v223 = vld [vmem:[%s199 + $0x4] sm:$0x3]
      %v224 = vld [vmem:[%s199 + $0x6] sm:$0x3]
      %v225 = vlaneseq
      %v226 = vshrl.u32 %v225, 7
      %v227 = vsub.s32 0, %v226
      %v228 = vrot.slane %v213, %v227
      %230 = vbcast.lane.b32.xlu0 %v228, 256
      %v231 = vpop.permute.xlu0 %230
      %s233 = sor.u32 256, 8
      %234 = vbcast.lane.b32.xlu0 %v228, %s233
      %v235 = vpop.permute.xlu0 %234
      %v236 = vlaneseq
      %v237 = vshrl.u32 %v236, 7
      %v238 = vsub.s32 1, %v237
      %v239 = vrot.slane %v213, %v238
      %241 = vbcast.lane.b32.xlu0 %v239, 256
      %v242 = vpop.permute.xlu0 %241
      %s244 = sor.u32 256, 8
      %245 = vbcast.lane.b32.xlu0 %v239, %s244
      %v246 = vpop.permute.xlu0 %245
      %v247 = vlaneseq
      %v248 = vshrl.u32 %v247, 7
      %v249 = vsub.s32 2, %v248
      %v250 = vrot.slane %v213, %v249
      %252 = vbcast.lane.b32.xlu0 %v250, 256
      %v253 = vpop.permute.xlu0 %252
      %s255 = sor.u32 256, 8
      %256 = vbcast.lane.b32.xlu0 %v250, %s255
      %v257 = vpop.permute.xlu0 %256
      %v258 = vlaneseq
      %v259 = vshrl.u32 %v258, 7
      %v260 = vsub.s32 3, %v259
      %v261 = vrot.slane %v213, %v260
      %263 = vbcast.lane.b32.xlu0 %v261, 256
      %v264 = vpop.permute.xlu0 %263
      %s266 = sor.u32 256, 8
      %267 = vbcast.lane.b32.xlu0 %v261, %s266
      %v268 = vpop.permute.xlu0 %267
      %v269 = vlaneseq
      %v270 = vshrl.u32 %v269, 7
      %v271 = vsub.s32 4, %v270
      %v272 = vrot.slane %v213, %v271
      %274 = vbcast.lane.b32.xlu0 %v272, 256
      %v275 = vpop.permute.xlu0 %274
      %s277 = sor.u32 256, 8
      %278 = vbcast.lane.b32.xlu0 %v272, %s277
      %v279 = vpop.permute.xlu0 %278
      %v280 = vlaneseq
      %v281 = vshrl.u32 %v280, 7
      %v282 = vsub.s32 5, %v281
      %v283 = vrot.slane %v213, %v282
      %285 = vbcast.lane.b32.xlu0 %v283, 256
      %v286 = vpop.permute.xlu0 %285
      %s288 = sor.u32 256, 8
      %289 = vbcast.lane.b32.xlu0 %v283, %s288
      %v290 = vpop.permute.xlu0 %289
      %v291 = vlaneseq
      %v292 = vshrl.u32 %v291, 7
      %v293 = vsub.s32 6, %v292
      %v294 = vrot.slane %v213, %v293
      %296 = vbcast.lane.b32.xlu0 %v294, 256
      %v297 = vpop.permute.xlu0 %296
      %s299 = sor.u32 256, 8
      %300 = vbcast.lane.b32.xlu0 %v294, %s299
      %v301 = vpop.permute.xlu0 %300
      %v302 = vlaneseq
      %v303 = vshrl.u32 %v302, 7
      %v304 = vsub.s32 7, %v303
      %v305 = vrot.slane %v213, %v304
      %307 = vbcast.lane.b32.xlu0 %v305, 256
      %v308 = vpop.permute.xlu0 %307
      %s310 = sor.u32 256, 8
      %311 = vbcast.lane.b32.xlu0 %v305, %s310
      %v312 = vpop.permute.xlu0 %311
      %v313 = vlaneseq
      %v314 = vshrl.u32 %v313, 7
      %v315 = vsub.s32 0, %v314
      %v316 = vrot.slane %v214, %v315
      %318 = vbcast.lane.b32.xlu0 %v316, 256
      %v319 = vpop.permute.xlu0 %318
      %s321 = sor.u32 256, 8
      %322 = vbcast.lane.b32.xlu0 %v316, %s321
      %v323 = vpop.permute.xlu0 %322
      %v324 = vlaneseq
      %v325 = vshrl.u32 %v324, 7
      %v326 = vsub.s32 1, %v325
      %v327 = vrot.slane %v214, %v326
      %329 = vbcast.lane.b32.xlu0 %v327, 256
      %v330 = vpop.permute.xlu0 %329
      %s332 = sor.u32 256, 8
      %333 = vbcast.lane.b32.xlu0 %v327, %s332
      %v334 = vpop.permute.xlu0 %333
      %v335 = vlaneseq
      %v336 = vshrl.u32 %v335, 7
      %v337 = vsub.s32 2, %v336
      %v338 = vrot.slane %v214, %v337
      %340 = vbcast.lane.b32.xlu0 %v338, 256
      %v341 = vpop.permute.xlu0 %340
      %s343 = sor.u32 256, 8
      %344 = vbcast.lane.b32.xlu0 %v338, %s343
      %v345 = vpop.permute.xlu0 %344
      %v346 = vlaneseq
      %v347 = vshrl.u32 %v346, 7
      %v348 = vsub.s32 3, %v347
      %v349 = vrot.slane %v214, %v348
      %351 = vbcast.lane.b32.xlu0 %v349, 256
      %v352 = vpop.permute.xlu0 %351
      %s354 = sor.u32 256, 8
      %355 = vbcast.lane.b32.xlu0 %v349, %s354
      %v356 = vpop.permute.xlu0 %355
      %v357 = vlaneseq
      %v358 = vshrl.u32 %v357, 7
      %v359 = vsub.s32 4, %v358
      %v360 = vrot.slane %v214, %v359
      %362 = vbcast.lane.b32.xlu0 %v360, 256
      %v363 = vpop.permute.xlu0 %362
      %s365 = sor.u32 256, 8
      %366 = vbcast.lane.b32.xlu0 %v360, %s365
      %v367 = vpop.permute.xlu0 %366
      %v368 = vlaneseq
      %v369 = vshrl.u32 %v368, 7
      %v370 = vsub.s32 5, %v369
      %v371 = vrot.slane %v214, %v370
      %373 = vbcast.lane.b32.xlu0 %v371, 256
      %v374 = vpop.permute.xlu0 %373
      %s376 = sor.u32 256, 8
      %377 = vbcast.lane.b32.xlu0 %v371, %s376
      %v378 = vpop.permute.xlu0 %377
      %v379 = vlaneseq
      %v380 = vshrl.u32 %v379, 7
      %v381 = vsub.s32 6, %v380
      %v382 = vrot.slane %v214, %v381
      %384 = vbcast.lane.b32.xlu0 %v382, 256
      %v385 = vpop.permute.xlu0 %384
      %s387 = sor.u32 256, 8
      %388 = vbcast.lane.b32.xlu0 %v382, %s387
      %v389 = vpop.permute.xlu0 %388
      %v390 = vlaneseq
      %v391 = vshrl.u32 %v390, 7
      %v392 = vsub.s32 7, %v391
      %v393 = vrot.slane %v214, %v392
      %395 = vbcast.lane.b32.xlu0 %v393, 256
      %v396 = vpop.permute.xlu0 %395
      %s398 = sor.u32 256, 8
      %399 = vbcast.lane.b32.xlu0 %v393, %s398
      %v400 = vpop.permute.xlu0 %399
      %v401 = vlaneseq
      %v402 = vshrl.u32 %v401, 7
      %v403 = vsub.s32 0, %v402
      %v404 = vrot.slane %v215, %v403
      %406 = vbcast.lane.b32.xlu0 %v404, 256
      %v407 = vpop.permute.xlu0 %406
      %s409 = sor.u32 256, 8
      %410 = vbcast.lane.b32.xlu0 %v404, %s409
      %v411 = vpop.permute.xlu0 %410
      %v412 = vlaneseq
      %v413 = vshrl.u32 %v412, 7
      %v414 = vsub.s32 1, %v413
      %v415 = vrot.slane %v215, %v414
      %417 = vbcast.lane.b32.xlu0 %v415, 256
      %v418 = vpop.permute.xlu0 %417
      %s420 = sor.u32 256, 8
      %421 = vbcast.lane.b32.xlu0 %v415, %s420
      %v422 = vpop.permute.xlu0 %421
      %v423 = vlaneseq
      %v424 = vshrl.u32 %v423, 7
      %v425 = vsub.s32 2, %v424
      %v426 = vrot.slane %v215, %v425
      %428 = vbcast.lane.b32.xlu0 %v426, 256
      %v429 = vpop.permute.xlu0 %428
      %s431 = sor.u32 256, 8
      %432 = vbcast.lane.b32.xlu0 %v426, %s431
      %v433 = vpop.permute.xlu0 %432
      %v434 = vlaneseq
      %v435 = vshrl.u32 %v434, 7
      %v436 = vsub.s32 3, %v435
      %v437 = vrot.slane %v215, %v436
      %439 = vbcast.lane.b32.xlu0 %v437, 256
      %v440 = vpop.permute.xlu0 %439
      %s442 = sor.u32 256, 8
      %443 = vbcast.lane.b32.xlu0 %v437, %s442
      %v444 = vpop.permute.xlu0 %443
      %v445 = vlaneseq
      %v446 = vshrl.u32 %v445, 7
      %v447 = vsub.s32 4, %v446
      %v448 = vrot.slane %v215, %v447
      %450 = vbcast.lane.b32.xlu0 %v448, 256
      %v451 = vpop.permute.xlu0 %450
      %s453 = sor.u32 256, 8
      %454 = vbcast.lane.b32.xlu0 %v448, %s453
      %v455 = vpop.permute.xlu0 %454
      %v456 = vlaneseq
      %v457 = vshrl.u32 %v456, 7
      %v458 = vsub.s32 5, %v457
      %v459 = vrot.slane %v215, %v458
      %461 = vbcast.lane.b32.xlu0 %v459, 256
      %v462 = vpop.permute.xlu0 %461
      %s464 = sor.u32 256, 8
      %465 = vbcast.lane.b32.xlu0 %v459, %s464
      %v466 = vpop.permute.xlu0 %465
      %v467 = vlaneseq
      %v468 = vshrl.u32 %v467, 7
      %v469 = vsub.s32 6, %v468
      %v470 = vrot.slane %v215, %v469
      %472 = vbcast.lane.b32.xlu0 %v470, 256
      %v473 = vpop.permute.xlu0 %472
      %s475 = sor.u32 256, 8
      %476 = vbcast.lane.b32.xlu0 %v470, %s475
      %v477 = vpop.permute.xlu0 %476
      %v478 = vlaneseq
      %v479 = vshrl.u32 %v478, 7
      %v480 = vsub.s32 7, %v479
      %v481 = vrot.slane %v215, %v480
      %483 = vbcast.lane.b32.xlu0 %v481, 256
      %v484 = vpop.permute.xlu0 %483
      %s486 = sor.u32 256, 8
      %487 = vbcast.lane.b32.xlu0 %v481, %s486
      %v488 = vpop.permute.xlu0 %487
      %v489 = vlaneseq
      %v490 = vshrl.u32 %v489, 7
      %v491 = vsub.s32 0, %v490
      %v492 = vrot.slane %v216, %v491
      %494 = vbcast.lane.b32.xlu0 %v492, 256
      %v495 = vpop.permute.xlu0 %494
      %s497 = sor.u32 256, 8
      %498 = vbcast.lane.b32.xlu0 %v492, %s497
      %v499 = vpop.permute.xlu0 %498
      %v500 = vlaneseq
      %v501 = vshrl.u32 %v500, 7
      %v502 = vsub.s32 1, %v501
      %v503 = vrot.slane %v216, %v502
      %505 = vbcast.lane.b32.xlu0 %v503, 256
      %v506 = vpop.permute.xlu0 %505
      %s508 = sor.u32 256, 8
      %509 = vbcast.lane.b32.xlu0 %v503, %s508
      %v510 = vpop.permute.xlu0 %509
      %v511 = vlaneseq
      %v512 = vshrl.u32 %v511, 7
      %v513 = vsub.s32 2, %v512
      %v514 = vrot.slane %v216, %v513
      %516 = vbcast.lane.b32.xlu0 %v514, 256
      %v517 = vpop.permute.xlu0 %516
      %s519 = sor.u32 256, 8
      %520 = vbcast.lane.b32.xlu0 %v514, %s519
      %v521 = vpop.permute.xlu0 %520
      %v522 = vlaneseq
      %v523 = vshrl.u32 %v522, 7
      %v524 = vsub.s32 3, %v523
      %v525 = vrot.slane %v216, %v524
      %527 = vbcast.lane.b32.xlu0 %v525, 256
      %v528 = vpop.permute.xlu0 %527
      %s530 = sor.u32 256, 8
      %531 = vbcast.lane.b32.xlu0 %v525, %s530
      %v532 = vpop.permute.xlu0 %531
      %v533 = vlaneseq
      %v534 = vshrl.u32 %v533, 7
      %v535 = vsub.s32 4, %v534
      %v536 = vrot.slane %v216, %v535
      %538 = vbcast.lane.b32.xlu0 %v536, 256
      %v539 = vpop.permute.xlu0 %538
      %s541 = sor.u32 256, 8
      %542 = vbcast.lane.b32.xlu0 %v536, %s541
      %v543 = vpop.permute.xlu0 %542
      %v544 = vlaneseq
      %v545 = vshrl.u32 %v544, 7
      %v546 = vsub.s32 5, %v545
      %v547 = vrot.slane %v216, %v546
      %549 = vbcast.lane.b32.xlu0 %v547, 256
      %v550 = vpop.permute.xlu0 %549
      %s552 = sor.u32 256, 8
      %553 = vbcast.lane.b32.xlu0 %v547, %s552
      %v554 = vpop.permute.xlu0 %553
      %v555 = vlaneseq
      %v556 = vshrl.u32 %v555, 7
      %v557 = vsub.s32 6, %v556
      %v558 = vrot.slane %v216, %v557
      %560 = vbcast.lane.b32.xlu0 %v558, 256
      %v561 = vpop.permute.xlu0 %560
      %s563 = sor.u32 256, 8
      %564 = vbcast.lane.b32.xlu0 %v558, %s563
      %v565 = vpop.permute.xlu0 %564
      %v566 = vlaneseq
      %v567 = vshrl.u32 %v566, 7
      %v568 = vsub.s32 7, %v567
      %v569 = vrot.slane %v216, %v568
      %571 = vbcast.lane.b32.xlu0 %v569, 256
      %v572 = vpop.permute.xlu0 %571
      %s574 = sor.u32 256, 8
      %575 = vbcast.lane.b32.xlu0 %v569, %s574
      %v576 = vpop.permute.xlu0 %575
      %v577 = vlaneseq
      %v578 = vshrl.u32 %v577, 7
      %v579 = vsub.s32 0, %v578
      %v580 = vrot.slane %v217, %v579
      %582 = vbcast.lane.b32.xlu0 %v580, 256
      %v583 = vpop.permute.xlu0 %582
      %s585 = sor.u32 256, 8
      %586 = vbcast.lane.b32.xlu0 %v580, %s585
      %v587 = vpop.permute.xlu0 %586
      %v588 = vlaneseq
      %v589 = vshrl.u32 %v588, 7
      %v590 = vsub.s32 1, %v589
      %v591 = vrot.slane %v217, %v590
      %593 = vbcast.lane.b32.xlu0 %v591, 256
      %v594 = vpop.permute.xlu0 %593
      %s596 = sor.u32 256, 8
      %597 = vbcast.lane.b32.xlu0 %v591, %s596
      %v598 = vpop.permute.xlu0 %597
      %v599 = vlaneseq
      %v600 = vshrl.u32 %v599, 7
      %v601 = vsub.s32 2, %v600
      %v602 = vrot.slane %v217, %v601
      %604 = vbcast.lane.b32.xlu0 %v602, 256
      %v605 = vpop.permute.xlu0 %604
      %s607 = sor.u32 256, 8
      %608 = vbcast.lane.b32.xlu0 %v602, %s607
      %v609 = vpop.permute.xlu0 %608
      %v610 = vlaneseq
      %v611 = vshrl.u32 %v610, 7
      %v612 = vsub.s32 3, %v611
      %v613 = vrot.slane %v217, %v612
      %615 = vbcast.lane.b32.xlu0 %v613, 256
      %v616 = vpop.permute.xlu0 %615
      %s618 = sor.u32 256, 8
      %619 = vbcast.lane.b32.xlu0 %v613, %s618
      %v620 = vpop.permute.xlu0 %619
      %v621 = vlaneseq
      %v622 = vshrl.u32 %v621, 7
      %v623 = vsub.s32 4, %v622
      %v624 = vrot.slane %v217, %v623
      %626 = vbcast.lane.b32.xlu0 %v624, 256
      %v627 = vpop.permute.xlu0 %626
      %s629 = sor.u32 256, 8
      %630 = vbcast.lane.b32.xlu0 %v624, %s629
      %v631 = vpop.permute.xlu0 %630
      %v632 = vlaneseq
      %v633 = vshrl.u32 %v632, 7
      %v634 = vsub.s32 5, %v633
      %v635 = vrot.slane %v217, %v634
      %637 = vbcast.lane.b32.xlu0 %v635, 256
      %v638 = vpop.permute.xlu0 %637
      %s640 = sor.u32 256, 8
      %641 = vbcast.lane.b32.xlu0 %v635, %s640
      %v642 = vpop.permute.xlu0 %641
      %v643 = vlaneseq
      %v644 = vshrl.u32 %v643, 7
      %v645 = vsub.s32 6, %v644
      %v646 = vrot.slane %v217, %v645
      %648 = vbcast.lane.b32.xlu0 %v646, 256
      %v649 = vpop.permute.xlu0 %648
      %s651 = sor.u32 256, 8
      %652 = vbcast.lane.b32.xlu0 %v646, %s651
      %v653 = vpop.permute.xlu0 %652
      %v654 = vlaneseq
      %v655 = vshrl.u32 %v654, 7
      %v656 = vsub.s32 7, %v655
      %v657 = vrot.slane %v217, %v656
      %659 = vbcast.lane.b32.xlu0 %v657, 256
      %v660 = vpop.permute.xlu0 %659
      %s662 = sor.u32 256, 8
      %663 = vbcast.lane.b32.xlu0 %v657, %s662
      %v664 = vpop.permute.xlu0 %663
      %v665 = vlaneseq
      %v666 = vshrl.u32 %v665, 7
      %v667 = vsub.s32 0, %v666
      %v668 = vrot.slane %v218, %v667
      %670 = vbcast.lane.b32.xlu0 %v668, 256
      %v671 = vpop.permute.xlu0 %670
      %s673 = sor.u32 256, 8
      %674 = vbcast.lane.b32.xlu0 %v668, %s673
      %v675 = vpop.permute.xlu0 %674
      %v676 = vlaneseq
      %v677 = vshrl.u32 %v676, 7
      %v678 = vsub.s32 1, %v677
      %v679 = vrot.slane %v218, %v678
      %681 = vbcast.lane.b32.xlu0 %v679, 256
      %v682 = vpop.permute.xlu0 %681
      %s684 = sor.u32 256, 8
      %685 = vbcast.lane.b32.xlu0 %v679, %s684
      %v686 = vpop.permute.xlu0 %685
      %v687 = vlaneseq
      %v688 = vshrl.u32 %v687, 7
      %v689 = vsub.s32 2, %v688
      %v690 = vrot.slane %v218, %v689
      %692 = vbcast.lane.b32.xlu0 %v690, 256
      %v693 = vpop.permute.xlu0 %692
      %s695 = sor.u32 256, 8
      %696 = vbcast.lane.b32.xlu0 %v690, %s695
      %v697 = vpop.permute.xlu0 %696
      %v698 = vlaneseq
      %v699 = vshrl.u32 %v698, 7
      %v700 = vsub.s32 3, %v699
      %v701 = vrot.slane %v218, %v700
      %703 = vbcast.lane.b32.xlu0 %v701, 256
      %v704 = vpop.permute.xlu0 %703
      %s706 = sor.u32 256, 8
      %707 = vbcast.lane.b32.xlu0 %v701, %s706
      %v708 = vpop.permute.xlu0 %707
      %v709 = vlaneseq
      %v710 = vshrl.u32 %v709, 7
      %v711 = vsub.s32 4, %v710
      %v712 = vrot.slane %v218, %v711
      %714 = vbcast.lane.b32.xlu0 %v712, 256
      %v715 = vpop.permute.xlu0 %714
      %s717 = sor.u32 256, 8
      %718 = vbcast.lane.b32.xlu0 %v712, %s717
      %v719 = vpop.permute.xlu0 %718
      %v720 = vlaneseq
      %v721 = vshrl.u32 %v720, 7
      %v722 = vsub.s32 5, %v721
      %v723 = vrot.slane %v218, %v722
      %725 = vbcast.lane.b32.xlu0 %v723, 256
      %v726 = vpop.permute.xlu0 %725
      %s728 = sor.u32 256, 8
      %729 = vbcast.lane.b32.xlu0 %v723, %s728
      %v730 = vpop.permute.xlu0 %729
      %v731 = vlaneseq
      %v732 = vshrl.u32 %v731, 7
      %v733 = vsub.s32 6, %v732
      %v734 = vrot.slane %v218, %v733
      %736 = vbcast.lane.b32.xlu0 %v734, 256
      %v737 = vpop.permute.xlu0 %736
      %s739 = sor.u32 256, 8
      %740 = vbcast.lane.b32.xlu0 %v734, %s739
      %v741 = vpop.permute.xlu0 %740
      %v742 = vlaneseq
      %v743 = vshrl.u32 %v742, 7
      %v744 = vsub.s32 7, %v743
      %v745 = vrot.slane %v218, %v744
      %747 = vbcast.lane.b32.xlu0 %v745, 256
      %v748 = vpop.permute.xlu0 %747
      %s750 = sor.u32 256, 8
      %751 = vbcast.lane.b32.xlu0 %v745, %s750
      %v752 = vpop.permute.xlu0 %751
      %v753 = vlaneseq
      %v754 = vshrl.u32 %v753, 7
      %v755 = vsub.s32 0, %v754
      %v756 = vrot.slane %v219, %v755
      %758 = vbcast.lane.b32.xlu0 %v756, 256
      %v759 = vpop.permute.xlu0 %758
      %s761 = sor.u32 256, 8
      %762 = vbcast.lane.b32.xlu0 %v756, %s761
      %v763 = vpop.permute.xlu0 %762
      %v764 = vlaneseq
      %v765 = vshrl.u32 %v764, 7
      %v766 = vsub.s32 1, %v765
      %v767 = vrot.slane %v219, %v766
      %769 = vbcast.lane.b32.xlu0 %v767, 256
      %v770 = vpop.permute.xlu0 %769
      %s772 = sor.u32 256, 8
      %773 = vbcast.lane.b32.xlu0 %v767, %s772
      %v774 = vpop.permute.xlu0 %773
      %v775 = vlaneseq
      %v776 = vshrl.u32 %v775, 7
      %v777 = vsub.s32 2, %v776
      %v778 = vrot.slane %v219, %v777
      %780 = vbcast.lane.b32.xlu0 %v778, 256
      %v781 = vpop.permute.xlu0 %780
      %s783 = sor.u32 256, 8
      %784 = vbcast.lane.b32.xlu0 %v778, %s783
      %v785 = vpop.permute.xlu0 %784
      %v786 = vlaneseq
      %v787 = vshrl.u32 %v786, 7
      %v788 = vsub.s32 3, %v787
      %v789 = vrot.slane %v219, %v788
      %791 = vbcast.lane.b32.xlu0 %v789, 256
      %v792 = vpop.permute.xlu0 %791
      %s794 = sor.u32 256, 8
      %795 = vbcast.lane.b32.xlu0 %v789, %s794
      %v796 = vpop.permute.xlu0 %795
      %v797 = vlaneseq
      %v798 = vshrl.u32 %v797, 7
      %v799 = vsub.s32 4, %v798
      %v800 = vrot.slane %v219, %v799
      %802 = vbcast.lane.b32.xlu0 %v800, 256
      %v803 = vpop.permute.xlu0 %802
      %s805 = sor.u32 256, 8
      %806 = vbcast.lane.b32.xlu0 %v800, %s805
      %v807 = vpop.permute.xlu0 %806
      %v808 = vlaneseq
      %v809 = vshrl.u32 %v808, 7
      %v810 = vsub.s32 5, %v809
      %v811 = vrot.slane %v219, %v810
      %813 = vbcast.lane.b32.xlu0 %v811, 256
      %v814 = vpop.permute.xlu0 %813
      %s816 = sor.u32 256, 8
      %817 = vbcast.lane.b32.xlu0 %v811, %s816
      %v818 = vpop.permute.xlu0 %817
      %v819 = vlaneseq
      %v820 = vshrl.u32 %v819, 7
      %v821 = vsub.s32 6, %v820
      %v822 = vrot.slane %v219, %v821
      %824 = vbcast.lane.b32.xlu0 %v822, 256
      %v825 = vpop.permute.xlu0 %824
      %s827 = sor.u32 256, 8
      %828 = vbcast.lane.b32.xlu0 %v822, %s827
      %v829 = vpop.permute.xlu0 %828
      %v830 = vlaneseq
      %v831 = vshrl.u32 %v830, 7
      %v832 = vsub.s32 7, %v831
      %v833 = vrot.slane %v219, %v832
      %835 = vbcast.lane.b32.xlu0 %v833, 256
      %v836 = vpop.permute.xlu0 %835
      %s838 = sor.u32 256, 8
      %839 = vbcast.lane.b32.xlu0 %v833, %s838
      %v840 = vpop.permute.xlu0 %839
      %v841 = vlaneseq
      %v842 = vshrl.u32 %v841, 7
      %v843 = vsub.s32 0, %v842
      %v844 = vrot.slane %v220, %v843
      %846 = vbcast.lane.b32.xlu0 %v844, 256
      %v847 = vpop.permute.xlu0 %846
      %s849 = sor.u32 256, 8
      %850 = vbcast.lane.b32.xlu0 %v844, %s849
      %v851 = vpop.permute.xlu0 %850
      %v852 = vlaneseq
      %v853 = vshrl.u32 %v852, 7
      %v854 = vsub.s32 1, %v853
      %v855 = vrot.slane %v220, %v854
      %857 = vbcast.lane.b32.xlu0 %v855, 256
      %v858 = vpop.permute.xlu0 %857
      %s860 = sor.u32 256, 8
      %861 = vbcast.lane.b32.xlu0 %v855, %s860
      %v862 = vpop.permute.xlu0 %861
      %v863 = vlaneseq
      %v864 = vshrl.u32 %v863, 7
      %v865 = vsub.s32 2, %v864
      %v866 = vrot.slane %v220, %v865
      %868 = vbcast.lane.b32.xlu0 %v866, 256
      %v869 = vpop.permute.xlu0 %868
      %s871 = sor.u32 256, 8
      %872 = vbcast.lane.b32.xlu0 %v866, %s871
      %v873 = vpop.permute.xlu0 %872
      %v874 = vlaneseq
      %v875 = vshrl.u32 %v874, 7
      %v876 = vsub.s32 3, %v875
      %v877 = vrot.slane %v220, %v876
      %879 = vbcast.lane.b32.xlu0 %v877, 256
      %v880 = vpop.permute.xlu0 %879
      %s882 = sor.u32 256, 8
      %883 = vbcast.lane.b32.xlu0 %v877, %s882
      %v884 = vpop.permute.xlu0 %883
      %v885 = vlaneseq
      %v886 = vshrl.u32 %v885, 7
      %v887 = vsub.s32 4, %v886
      %v888 = vrot.slane %v220, %v887
      %890 = vbcast.lane.b32.xlu0 %v888, 256
      %v891 = vpop.permute.xlu0 %890
      %s893 = sor.u32 256, 8
      %894 = vbcast.lane.b32.xlu0 %v888, %s893
      %v895 = vpop.permute.xlu0 %894
      %v896 = vlaneseq
      %v897 = vshrl.u32 %v896, 7
      %v898 = vsub.s32 5, %v897
      %v899 = vrot.slane %v220, %v898
      %901 = vbcast.lane.b32.xlu0 %v899, 256
      %v902 = vpop.permute.xlu0 %901
      %s904 = sor.u32 256, 8
      %905 = vbcast.lane.b32.xlu0 %v899, %s904
      %v906 = vpop.permute.xlu0 %905
      %v907 = vlaneseq
      %v908 = vshrl.u32 %v907, 7
      %v909 = vsub.s32 6, %v908
      %v910 = vrot.slane %v220, %v909
      %912 = vbcast.lane.b32.xlu0 %v910, 256
      %v913 = vpop.permute.xlu0 %912
      %s915 = sor.u32 256, 8
      %916 = vbcast.lane.b32.xlu0 %v910, %s915
      %v917 = vpop.permute.xlu0 %916
      %v918 = vlaneseq
      %v919 = vshrl.u32 %v918, 7
      %v920 = vsub.s32 7, %v919
      %v921 = vrot.slane %v220, %v920
      %923 = vbcast.lane.b32.xlu0 %v921, 256
      %v924 = vpop.permute.xlu0 %923
      %s926 = sor.u32 256, 8
      %927 = vbcast.lane.b32.xlu0 %v921, %s926
      %v928 = vpop.permute.xlu0 %927
      %v929 = vcombine.low %v231, %v253
      %v930 = vcombine.high %v231, %v253
      %v932 = vunpack.c.l.s4 1983009808
      %v933 = vunpack.c.0.s8 %v932
      %v934 = vlaneseq
      %v935 = vshrl.u32 %v934, 7
      %v936 = vsub.s32 %v933, %v935
      %v937 = vrot.slane %v929, %v936
      %v939 = vunpack.c.l.s4 1983009808
      %v940 = vunpack.c.0.s8 %v939
      %v941 = vlaneseq
      %v942 = vshrl.u32 %v941, 7
      %v943 = vsub.s32 %v940, %v942
      %v944 = vrot.slane %v930, %v943
      %v945 = vcombine.low %v242, %v264
      %v946 = vcombine.high %v242, %v264
      %v948 = vunpack.c.l.s4 1983009808
      %v949 = vunpack.c.0.s8 %v948
      %v950 = vlaneseq
      %v951 = vshrl.u32 %v950, 7
      %v952 = vsub.s32 %v949, %v951
      %v953 = vrot.slane %v945, %v952
      %v955 = vunpack.c.l.s4 1983009808
      %v956 = vunpack.c.0.s8 %v955
      %v957 = vlaneseq
      %v958 = vshrl.u32 %v957, 7
      %v959 = vsub.s32 %v956, %v958
      %v960 = vrot.slane %v946, %v959
      %v961 = vcombine.low %v275, %v297
      %v962 = vcombine.high %v275, %v297
      %v964 = vunpack.c.l.s4 1983009808
      %v965 = vunpack.c.0.s8 %v964
      %v966 = vlaneseq
      %v967 = vshrl.u32 %v966, 7
      %v968 = vsub.s32 %v965, %v967
      %v969 = vrot.slane %v961, %v968
      %v971 = vunpack.c.l.s4 1983009808
      %v972 = vunpack.c.0.s8 %v971
      %v973 = vlaneseq
      %v974 = vshrl.u32 %v973, 7
      %v975 = vsub.s32 %v972, %v974
      %v976 = vrot.slane %v962, %v975
      %v977 = vcombine.low %v286, %v308
      %v978 = vcombine.high %v286, %v308
      %v980 = vunpack.c.l.s4 1983009808
      %v981 = vunpack.c.0.s8 %v980
      %v982 = vlaneseq
      %v983 = vshrl.u32 %v982, 7
      %v984 = vsub.s32 %v981, %v983
      %v985 = vrot.slane %v977, %v984
      %v987 = vunpack.c.l.s4 1983009808
      %v988 = vunpack.c.0.s8 %v987
      %v989 = vlaneseq
      %v990 = vshrl.u32 %v989, 7
      %v991 = vsub.s32 %v988, %v990
      %v992 = vrot.slane %v978, %v991
      %v993 = vcombine.low %v937, %v953
      %v994 = vcombine.high %v937, %v953
      %v996 = vunpack.c.l.s4 1934713408
      %v997 = vunpack.c.0.s8 %v996
      %v998 = vlaneseq
      %v999 = vshrl.u32 %v998, 7
      %v1000 = vsub.s32 %v997, %v999
      %v1001 = vrot.slane %v993, %v1000
      %v1003 = vunpack.c.l.s4 1934713408
      %v1004 = vunpack.c.0.s8 %v1003
      %v1005 = vlaneseq
      %v1006 = vshrl.u32 %v1005, 7
      %v1007 = vsub.s32 %v1004, %v1006
      %v1008 = vrot.slane %v994, %v1007
      %v1009 = vcombine.low %v944, %v960
      %v1010 = vcombine.high %v944, %v960
      %v1012 = vunpack.c.l.s4 1934713408
      %v1013 = vunpack.c.0.s8 %v1012
      %v1014 = vlaneseq
      %v1015 = vshrl.u32 %v1014, 7
      %v1016 = vsub.s32 %v1013, %v1015
      %v1017 = vrot.slane %v1009, %v1016
      %v1019 = vunpack.c.l.s4 1934713408
      %v1020 = vunpack.c.0.s8 %v1019
      %v1021 = vlaneseq
      %v1022 = vshrl.u32 %v1021, 7
      %v1023 = vsub.s32 %v1020, %v1022
      %v1024 = vrot.slane %v1010, %v1023
      %v1025 = vcombine.low %v969, %v985
      %v1026 = vcombine.high %v969, %v985
      %v1028 = vunpack.c.l.s4 1934713408
      %v1029 = vunpack.c.0.s8 %v1028
      %v1030 = vlaneseq
      %v1031 = vshrl.u32 %v1030, 7
      %v1032 = vsub.s32 %v1029, %v1031
      %v1033 = vrot.slane %v1025, %v1032
      %v1035 = vunpack.c.l.s4 1934713408
      %v1036 = vunpack.c.0.s8 %v1035
      %v1037 = vlaneseq
      %v1038 = vshrl.u32 %v1037, 7
      %v1039 = vsub.s32 %v1036, %v1038
      %v1040 = vrot.slane %v1026, %v1039
      %v1041 = vcombine.low %v976, %v992
      %v1042 = vcombine.high %v976, %v992
      %v1044 = vunpack.c.l.s4 1934713408
      %v1045 = vunpack.c.0.s8 %v1044
      %v1046 = vlaneseq
      %v1047 = vshrl.u32 %v1046, 7
      %v1048 = vsub.s32 %v1045, %v1047
      %v1049 = vrot.slane %v1041, %v1048
      %v1051 = vunpack.c.l.s4 1934713408
      %v1052 = vunpack.c.0.s8 %v1051
      %v1053 = vlaneseq
      %v1054 = vshrl.u32 %v1053, 7
      %v1055 = vsub.s32 %v1052, %v1054
      %v1056 = vrot.slane %v1042, %v1055
      %v1057 = vcombine.low %v1001, %v1033
      %v1058 = vcombine.high %v1001, %v1033
      %v1059 = vcombine.low %v1008, %v1040
      %v1060 = vcombine.high %v1008, %v1040
      %v1061 = vcombine.low %v1017, %v1049
      %v1062 = vcombine.high %v1017, %v1049
      %v1063 = vcombine.low %v1024, %v1056
      %v1064 = vcombine.high %v1024, %v1056
      %v1065 = vcombine.low %v319, %v341
      %v1066 = vcombine.high %v319, %v341
      %v1068 = vunpack.c.l.s4 1983009808
      %v1069 = vunpack.c.0.s8 %v1068
      %v1070 = vlaneseq
      %v1071 = vshrl.u32 %v1070, 7
      %v1072 = vsub.s32 %v1069, %v1071
      %v1073 = vrot.slane %v1065, %v1072
      %v1075 = vunpack.c.l.s4 1983009808
      %v1076 = vunpack.c.0.s8 %v1075
      %v1077 = vlaneseq
      %v1078 = vshrl.u32 %v1077, 7
      %v1079 = vsub.s32 %v1076, %v1078
      %v1080 = vrot.slane %v1066, %v1079
      %v1081 = vcombine.low %v330, %v352
      %v1082 = vcombine.high %v330, %v352
      %v1084 = vunpack.c.l.s4 1983009808
      %v1085 = vunpack.c.0.s8 %v1084
      %v1086 = vlaneseq
      %v1087 = vshrl.u32 %v1086, 7
      %v1088 = vsub.s32 %v1085, %v1087
      %v1089 = vrot.slane %v1081, %v1088
      %v1091 = vunpack.c.l.s4 1983009808
      %v1092 = vunpack.c.0.s8 %v1091
      %v1093 = vlaneseq
      %v1094 = vshrl.u32 %v1093, 7
      %v1095 = vsub.s32 %v1092, %v1094
      %v1096 = vrot.slane %v1082, %v1095
      %v1097 = vcombine.low %v363, %v385
      %v1098 = vcombine.high %v363, %v385
      %v1100 = vunpack.c.l.s4 1983009808
      %v1101 = vunpack.c.0.s8 %v1100
      %v1102 = vlaneseq
      %v1103 = vshrl.u32 %v1102, 7
      %v1104 = vsub.s32 %v1101, %v1103
      %v1105 = vrot.slane %v1097, %v1104
      %v1107 = vunpack.c.l.s4 1983009808
      %v1108 = vunpack.c.0.s8 %v1107
      %v1109 = vlaneseq
      %v1110 = vshrl.u32 %v1109, 7
      %v1111 = vsub.s32 %v1108, %v1110
      %v1112 = vrot.slane %v1098, %v1111
      %v1113 = vcombine.low %v374, %v396
      %v1114 = vcombine.high %v374, %v396
      %v1116 = vunpack.c.l.s4 1983009808
      %v1117 = vunpack.c.0.s8 %v1116
      %v1118 = vlaneseq
      %v1119 = vshrl.u32 %v1118, 7
      %v1120 = vsub.s32 %v1117, %v1119
      %v1121 = vrot.slane %v1113, %v1120
      %v1123 = vunpack.c.l.s4 1983009808
      %v1124 = vunpack.c.0.s8 %v1123
      %v1125 = vlaneseq
      %v1126 = vshrl.u32 %v1125, 7
      %v1127 = vsub.s32 %v1124, %v1126
      %v1128 = vrot.slane %v1114, %v1127
      %v1129 = vcombine.low %v1073, %v1089
      %v1130 = vcombine.high %v1073, %v1089
      %v1132 = vunpack.c.l.s4 1934713408
      %v1133 = vunpack.c.0.s8 %v1132
      %v1134 = vlaneseq
      %v1135 = vshrl.u32 %v1134, 7
      %v1136 = vsub.s32 %v1133, %v1135
      %v1137 = vrot.slane %v1129, %v1136
      %v1139 = vunpack.c.l.s4 1934713408
      %v1140 = vunpack.c.0.s8 %v1139
      %v1141 = vlaneseq
      %v1142 = vshrl.u32 %v1141, 7
      %v1143 = vsub.s32 %v1140, %v1142
      %v1144 = vrot.slane %v1130, %v1143
      %v1145 = vcombine.low %v1080, %v1096
      %v1146 = vcombine.high %v1080, %v1096
      %v1148 = vunpack.c.l.s4 1934713408
      %v1149 = vunpack.c.0.s8 %v1148
      %v1150 = vlaneseq
      %v1151 = vshrl.u32 %v1150, 7
      %v1152 = vsub.s32 %v1149, %v1151
      %v1153 = vrot.slane %v1145, %v1152
      %v1155 = vunpack.c.l.s4 1934713408
      %v1156 = vunpack.c.0.s8 %v1155
      %v1157 = vlaneseq
      %v1158 = vshrl.u32 %v1157, 7
      %v1159 = vsub.s32 %v1156, %v1158
      %v1160 = vrot.slane %v1146, %v1159
      %v1161 = vcombine.low %v1105, %v1121
      %v1162 = vcombine.high %v1105, %v1121
      %v1164 = vunpack.c.l.s4 1934713408
      %v1165 = vunpack.c.0.s8 %v1164
      %v1166 = vlaneseq
      %v1167 = vshrl.u32 %v1166, 7
      %v1168 = vsub.s32 %v1165, %v1167
      %v1169 = vrot.slane %v1161, %v1168
      %v1171 = vunpack.c.l.s4 1934713408
      %v1172 = vunpack.c.0.s8 %v1171
      %v1173 = vlaneseq
      %v1174 = vshrl.u32 %v1173, 7
      %v1175 = vsub.s32 %v1172, %v1174
      %v1176 = vrot.slane %v1162, %v1175
      %v1177 = vcombine.low %v1112, %v1128
      %v1178 = vcombine.high %v1112, %v1128
      %v1180 = vunpack.c.l.s4 1934713408
      %v1181 = vunpack.c.0.s8 %v1180
      %v1182 = vlaneseq
      %v1183 = vshrl.u32 %v1182, 7
      %v1184 = vsub.s32 %v1181, %v1183
      %v1185 = vrot.slane %v1177, %v1184
      %v1187 = vunpack.c.l.s4 1934713408
      %v1188 = vunpack.c.0.s8 %v1187
      %v1189 = vlaneseq
      %v1190 = vshrl.u32 %v1189, 7
      %v1191 = vsub.s32 %v1188, %v1190
      %v1192 = vrot.slane %v1178, %v1191
      %v1193 = vcombine.low %v1137, %v1169
      %v1194 = vcombine.high %v1137, %v1169
      %v1195 = vcombine.low %v1144, %v1176
      %v1196 = vcombine.high %v1144, %v1176
      %v1197 = vcombine.low %v1153, %v1185
      %v1198 = vcombine.high %v1153, %v1185
      %v1199 = vcombine.low %v1160, %v1192
      %v1200 = vcombine.high %v1160, %v1192
      %v1201 = vcombine.low %v235, %v257
      %v1202 = vcombine.high %v235, %v257
      %v1204 = vunpack.c.l.s4 1983009808
      %v1205 = vunpack.c.0.s8 %v1204
      %v1206 = vlaneseq
      %v1207 = vshrl.u32 %v1206, 7
      %v1208 = vsub.s32 %v1205, %v1207
      %v1209 = vrot.slane %v1201, %v1208
      %v1211 = vunpack.c.l.s4 1983009808
      %v1212 = vunpack.c.0.s8 %v1211
      %v1213 = vlaneseq
      %v1214 = vshrl.u32 %v1213, 7
      %v1215 = vsub.s32 %v1212, %v1214
      %v1216 = vrot.slane %v1202, %v1215
      %v1217 = vcombine.low %v246, %v268
      %v1218 = vcombine.high %v246, %v268
      %v1220 = vunpack.c.l.s4 1983009808
      %v1221 = vunpack.c.0.s8 %v1220
      %v1222 = vlaneseq
      %v1223 = vshrl.u32 %v1222, 7
      %v1224 = vsub.s32 %v1221, %v1223
      %v1225 = vrot.slane %v1217, %v1224
      %v1227 = vunpack.c.l.s4 1983009808
      %v1228 = vunpack.c.0.s8 %v1227
      %v1229 = vlaneseq
      %v1230 = vshrl.u32 %v1229, 7
      %v1231 = vsub.s32 %v1228, %v1230
      %v1232 = vrot.slane %v1218, %v1231
      %v1233 = vcombine.low %v279, %v301
      %v1234 = vcombine.high %v279, %v301
      %v1236 = vunpack.c.l.s4 1983009808
      %v1237 = vunpack.c.0.s8 %v1236
      %v1238 = vlaneseq
      %v1239 = vshrl.u32 %v1238, 7
      %v1240 = vsub.s32 %v1237, %v1239
      %v1241 = vrot.slane %v1233, %v1240
      %v1243 = vunpack.c.l.s4 1983009808
      %v1244 = vunpack.c.0.s8 %v1243
      %v1245 = vlaneseq
      %v1246 = vshrl.u32 %v1245, 7
      %v1247 = vsub.s32 %v1244, %v1246
      %v1248 = vrot.slane %v1234, %v1247
      %v1249 = vcombine.low %v290, %v312
      %v1250 = vcombine.high %v290, %v312
      %v1252 = vunpack.c.l.s4 1983009808
      %v1253 = vunpack.c.0.s8 %v1252
      %v1254 = vlaneseq
      %v1255 = vshrl.u32 %v1254, 7
      %v1256 = vsub.s32 %v1253, %v1255
      %v1257 = vrot.slane %v1249, %v1256
      %v1259 = vunpack.c.l.s4 1983009808
      %v1260 = vunpack.c.0.s8 %v1259
      %v1261 = vlaneseq
      %v1262 = vshrl.u32 %v1261, 7
      %v1263 = vsub.s32 %v1260, %v1262
      %v1264 = vrot.slane %v1250, %v1263
      %v1265 = vcombine.low %v1209, %v1225
      %v1266 = vcombine.high %v1209, %v1225
      %v1268 = vunpack.c.l.s4 1934713408
      %v1269 = vunpack.c.0.s8 %v1268
      %v1270 = vlaneseq
      %v1271 = vshrl.u32 %v1270, 7
      %v1272 = vsub.s32 %v1269, %v1271
      %v1273 = vrot.slane %v1265, %v1272
      %v1275 = vunpack.c.l.s4 1934713408
      %v1276 = vunpack.c.0.s8 %v1275
      %v1277 = vlaneseq
      %v1278 = vshrl.u32 %v1277, 7
      %v1279 = vsub.s32 %v1276, %v1278
      %v1280 = vrot.slane %v1266, %v1279
      %v1281 = vcombine.low %v1216, %v1232
      %v1282 = vcombine.high %v1216, %v1232
      %v1284 = vunpack.c.l.s4 1934713408
      %v1285 = vunpack.c.0.s8 %v1284
      %v1286 = vlaneseq
      %v1287 = vshrl.u32 %v1286, 7
      %v1288 = vsub.s32 %v1285, %v1287
      %v1289 = vrot.slane %v1281, %v1288
      %v1291 = vunpack.c.l.s4 1934713408
      %v1292 = vunpack.c.0.s8 %v1291
      %v1293 = vlaneseq
      %v1294 = vshrl.u32 %v1293, 7
      %v1295 = vsub.s32 %v1292, %v1294
      %v1296 = vrot.slane %v1282, %v1295
      %v1297 = vcombine.low %v1241, %v1257
      %v1298 = vcombine.high %v1241, %v1257
      %v1300 = vunpack.c.l.s4 1934713408
      %v1301 = vunpack.c.0.s8 %v1300
      %v1302 = vlaneseq
      %v1303 = vshrl.u32 %v1302, 7
      %v1304 = vsub.s32 %v1301, %v1303
      %v1305 = vrot.slane %v1297, %v1304
      %v1307 = vunpack.c.l.s4 1934713408
      %v1308 = vunpack.c.0.s8 %v1307
      %v1309 = vlaneseq
      %v1310 = vshrl.u32 %v1309, 7
      %v1311 = vsub.s32 %v1308, %v1310
      %v1312 = vrot.slane %v1298, %v1311
      %v1313 = vcombine.low %v1248, %v1264
      %v1314 = vcombine.high %v1248, %v1264
      %v1316 = vunpack.c.l.s4 1934713408
      %v1317 = vunpack.c.0.s8 %v1316
      %v1318 = vlaneseq
      %v1319 = vshrl.u32 %v1318, 7
      %v1320 = vsub.s32 %v1317, %v1319
      %v1321 = vrot.slane %v1313, %v1320
      %v1323 = vunpack.c.l.s4 1934713408
      %v1324 = vunpack.c.0.s8 %v1323
      %v1325 = vlaneseq
      %v1326 = vshrl.u32 %v1325, 7
      %v1327 = vsub.s32 %v1324, %v1326
      %v1328 = vrot.slane %v1314, %v1327
      %v1329 = vcombine.low %v1273, %v1305
      %v1330 = vcombine.high %v1273, %v1305
      %v1331 = vcombine.low %v1280, %v1312
      %v1332 = vcombine.high %v1280, %v1312
      %v1333 = vcombine.low %v1289, %v1321
      %v1334 = vcombine.high %v1289, %v1321
      %v1335 = vcombine.low %v1296, %v1328
      %v1336 = vcombine.high %v1296, %v1328
      %v1337 = vcombine.low %v323, %v345
      %v1338 = vcombine.high %v323, %v345
      %v1340 = vunpack.c.l.s4 1983009808
      %v1341 = vunpack.c.0.s8 %v1340
      %v1342 = vlaneseq
      %v1343 = vshrl.u32 %v1342, 7
      %v1344 = vsub.s32 %v1341, %v1343
      %v1345 = vrot.slane %v1337, %v1344
      %v1347 = vunpack.c.l.s4 1983009808
      %v1348 = vunpack.c.0.s8 %v1347
      %v1349 = vlaneseq
      %v1350 = vshrl.u32 %v1349, 7
      %v1351 = vsub.s32 %v1348, %v1350
      %v1352 = vrot.slane %v1338, %v1351
      %v1353 = vcombine.low %v334, %v356
      %v1354 = vcombine.high %v334, %v356
      %v1356 = vunpack.c.l.s4 1983009808
      %v1357 = vunpack.c.0.s8 %v1356
      %v1358 = vlaneseq
      %v1359 = vshrl.u32 %v1358, 7
      %v1360 = vsub.s32 %v1357, %v1359
      %v1361 = vrot.slane %v1353, %v1360
      %v1363 = vunpack.c.l.s4 1983009808
      %v1364 = vunpack.c.0.s8 %v1363
      %v1365 = vlaneseq
      %v1366 = vshrl.u32 %v1365, 7
      %v1367 = vsub.s32 %v1364, %v1366
      %v1368 = vrot.slane %v1354, %v1367
      %v1369 = vcombine.low %v367, %v389
      %v1370 = vcombine.high %v367, %v389
      %v1372 = vunpack.c.l.s4 1983009808
      %v1373 = vunpack.c.0.s8 %v1372
      %v1374 = vlaneseq
      %v1375 = vshrl.u32 %v1374, 7
      %v1376 = vsub.s32 %v1373, %v1375
      %v1377 = vrot.slane %v1369, %v1376
      %v1379 = vunpack.c.l.s4 1983009808
      %v1380 = vunpack.c.0.s8 %v1379
      %v1381 = vlaneseq
      %v1382 = vshrl.u32 %v1381, 7
      %v1383 = vsub.s32 %v1380, %v1382
      %v1384 = vrot.slane %v1370, %v1383
      %v1385 = vcombine.low %v378, %v400
      %v1386 = vcombine.high %v378, %v400
      %v1388 = vunpack.c.l.s4 1983009808
      %v1389 = vunpack.c.0.s8 %v1388
      %v1390 = vlaneseq
      %v1391 = vshrl.u32 %v1390, 7
      %v1392 = vsub.s32 %v1389, %v1391
      %v1393 = vrot.slane %v1385, %v1392
      %v1395 = vunpack.c.l.s4 1983009808
      %v1396 = vunpack.c.0.s8 %v1395
      %v1397 = vlaneseq
      %v1398 = vshrl.u32 %v1397, 7
      %v1399 = vsub.s32 %v1396, %v1398
      %v1400 = vrot.slane %v1386, %v1399
      %v1401 = vcombine.low %v1345, %v1361
      %v1402 = vcombine.high %v1345, %v1361
      %v1404 = vunpack.c.l.s4 1934713408
      %v1405 = vunpack.c.0.s8 %v1404
      %v1406 = vlaneseq
      %v1407 = vshrl.u32 %v1406, 7
      %v1408 = vsub.s32 %v1405, %v1407
      %v1409 = vrot.slane %v1401, %v1408
      %v1411 = vunpack.c.l.s4 1934713408
      %v1412 = vunpack.c.0.s8 %v1411
      %v1413 = vlaneseq
      %v1414 = vshrl.u32 %v1413, 7
      %v1415 = vsub.s32 %v1412, %v1414
      %v1416 = vrot.slane %v1402, %v1415
      %v1417 = vcombine.low %v1352, %v1368
      %v1418 = vcombine.high %v1352, %v1368
      %v1420 = vunpack.c.l.s4 1934713408
      %v1421 = vunpack.c.0.s8 %v1420
      %v1422 = vlaneseq
      %v1423 = vshrl.u32 %v1422, 7
      %v1424 = vsub.s32 %v1421, %v1423
      %v1425 = vrot.slane %v1417, %v1424
      %v1427 = vunpack.c.l.s4 1934713408
      %v1428 = vunpack.c.0.s8 %v1427
      %v1429 = vlaneseq
      %v1430 = vshrl.u32 %v1429, 7
      %v1431 = vsub.s32 %v1428, %v1430
      %v1432 = vrot.slane %v1418, %v1431
      %v1433 = vcombine.low %v1377, %v1393
      %v1434 = vcombine.high %v1377, %v1393
      %v1436 = vunpack.c.l.s4 1934713408
      %v1437 = vunpack.c.0.s8 %v1436
      %v1438 = vlaneseq
      %v1439 = vshrl.u32 %v1438, 7
      %v1440 = vsub.s32 %v1437, %v1439
      %v1441 = vrot.slane %v1433, %v1440
      %v1443 = vunpack.c.l.s4 1934713408
      %v1444 = vunpack.c.0.s8 %v1443
      %v1445 = vlaneseq
      %v1446 = vshrl.u32 %v1445, 7
      %v1447 = vsub.s32 %v1444, %v1446
      %v1448 = vrot.slane %v1434, %v1447
      %v1449 = vcombine.low %v1384, %v1400
      %v1450 = vcombine.high %v1384, %v1400
      %v1452 = vunpack.c.l.s4 1934713408
      %v1453 = vunpack.c.0.s8 %v1452
      %v1454 = vlaneseq
      %v1455 = vshrl.u32 %v1454, 7
      %v1456 = vsub.s32 %v1453, %v1455
      %v1457 = vrot.slane %v1449, %v1456
      %v1459 = vunpack.c.l.s4 1934713408
      %v1460 = vunpack.c.0.s8 %v1459
      %v1461 = vlaneseq
      %v1462 = vshrl.u32 %v1461, 7
      %v1463 = vsub.s32 %v1460, %v1462
      %v1464 = vrot.slane %v1450, %v1463
      %v1465 = vcombine.low %v1409, %v1441
      %v1466 = vcombine.high %v1409, %v1441
      %v1467 = vcombine.low %v1416, %v1448
      %v1468 = vcombine.high %v1416, %v1448
      %v1469 = vcombine.low %v1425, %v1457
      %v1470 = vcombine.high %v1425, %v1457
      %v1471 = vcombine.low %v1432, %v1464
      %v1472 = vcombine.high %v1432, %v1464
      %v1473 = vcombine.low %v407, %v429
      %v1474 = vcombine.high %v407, %v429
      %v1476 = vunpack.c.l.s4 1983009808
      %v1477 = vunpack.c.0.s8 %v1476
      %v1478 = vlaneseq
      %v1479 = vshrl.u32 %v1478, 7
      %v1480 = vsub.s32 %v1477, %v1479
      %v1481 = vrot.slane %v1473, %v1480
      %v1483 = vunpack.c.l.s4 1983009808
      %v1484 = vunpack.c.0.s8 %v1483
      %v1485 = vlaneseq
      %v1486 = vshrl.u32 %v1485, 7
      %v1487 = vsub.s32 %v1484, %v1486
      %v1488 = vrot.slane %v1474, %v1487
      %v1489 = vcombine.low %v418, %v440
      %v1490 = vcombine.high %v418, %v440
      %v1492 = vunpack.c.l.s4 1983009808
      %v1493 = vunpack.c.0.s8 %v1492
      %v1494 = vlaneseq
      %v1495 = vshrl.u32 %v1494, 7
      %v1496 = vsub.s32 %v1493, %v1495
      %v1497 = vrot.slane %v1489, %v1496
      %v1499 = vunpack.c.l.s4 1983009808
      %v1500 = vunpack.c.0.s8 %v1499
      %v1501 = vlaneseq
      %v1502 = vshrl.u32 %v1501, 7
      %v1503 = vsub.s32 %v1500, %v1502
      %v1504 = vrot.slane %v1490, %v1503
      %v1505 = vcombine.low %v451, %v473
      %v1506 = vcombine.high %v451, %v473
      %v1508 = vunpack.c.l.s4 1983009808
      %v1509 = vunpack.c.0.s8 %v1508
      %v1510 = vlaneseq
      %v1511 = vshrl.u32 %v1510, 7
      %v1512 = vsub.s32 %v1509, %v1511
      %v1513 = vrot.slane %v1505, %v1512
      %v1515 = vunpack.c.l.s4 1983009808
      %v1516 = vunpack.c.0.s8 %v1515
      %v1517 = vlaneseq
      %v1518 = vshrl.u32 %v1517, 7
      %v1519 = vsub.s32 %v1516, %v1518
      %v1520 = vrot.slane %v1506, %v1519
      %v1521 = vcombine.low %v462, %v484
      %v1522 = vcombine.high %v462, %v484
      %v1524 = vunpack.c.l.s4 1983009808
      %v1525 = vunpack.c.0.s8 %v1524
      %v1526 = vlaneseq
      %v1527 = vshrl.u32 %v1526, 7
      %v1528 = vsub.s32 %v1525, %v1527
      %v1529 = vrot.slane %v1521, %v1528
      %v1531 = vunpack.c.l.s4 1983009808
      %v1532 = vunpack.c.0.s8 %v1531
      %v1533 = vlaneseq
      %v1534 = vshrl.u32 %v1533, 7
      %v1535 = vsub.s32 %v1532, %v1534
      %v1536 = vrot.slane %v1522, %v1535
      %v1537 = vcombine.low %v1481, %v1497
      %v1538 = vcombine.high %v1481, %v1497
      %v1540 = vunpack.c.l.s4 1934713408
      %v1541 = vunpack.c.0.s8 %v1540
      %v1542 = vlaneseq
      %v1543 = vshrl.u32 %v1542, 7
      %v1544 = vsub.s32 %v1541, %v1543
      %v1545 = vrot.slane %v1537, %v1544
      %v1547 = vunpack.c.l.s4 1934713408
      %v1548 = vunpack.c.0.s8 %v1547
      %v1549 = vlaneseq
      %v1550 = vshrl.u32 %v1549, 7
      %v1551 = vsub.s32 %v1548, %v1550
      %v1552 = vrot.slane %v1538, %v1551
      %v1553 = vcombine.low %v1488, %v1504
      %v1554 = vcombine.high %v1488, %v1504
      %v1556 = vunpack.c.l.s4 1934713408
      %v1557 = vunpack.c.0.s8 %v1556
      %v1558 = vlaneseq
      %v1559 = vshrl.u32 %v1558, 7
      %v1560 = vsub.s32 %v1557, %v1559
      %v1561 = vrot.slane %v1553, %v1560
      %v1563 = vunpack.c.l.s4 1934713408
      %v1564 = vunpack.c.0.s8 %v1563
      %v1565 = vlaneseq
      %v1566 = vshrl.u32 %v1565, 7
      %v1567 = vsub.s32 %v1564, %v1566
      %v1568 = vrot.slane %v1554, %v1567
      %v1569 = vcombine.low %v1513, %v1529
      %v1570 = vcombine.high %v1513, %v1529
      %v1572 = vunpack.c.l.s4 1934713408
      %v1573 = vunpack.c.0.s8 %v1572
      %v1574 = vlaneseq
      %v1575 = vshrl.u32 %v1574, 7
      %v1576 = vsub.s32 %v1573, %v1575
      %v1577 = vrot.slane %v1569, %v1576
      %v1579 = vunpack.c.l.s4 1934713408
      %v1580 = vunpack.c.0.s8 %v1579
      %v1581 = vlaneseq
      %v1582 = vshrl.u32 %v1581, 7
      %v1583 = vsub.s32 %v1580, %v1582
      %v1584 = vrot.slane %v1570, %v1583
      %v1585 = vcombine.low %v1520, %v1536
      %v1586 = vcombine.high %v1520, %v1536
      %v1588 = vunpack.c.l.s4 1934713408
      %v1589 = vunpack.c.0.s8 %v1588
      %v1590 = vlaneseq
      %v1591 = vshrl.u32 %v1590, 7
      %v1592 = vsub.s32 %v1589, %v1591
      %v1593 = vrot.slane %v1585, %v1592
      %v1595 = vunpack.c.l.s4 1934713408
      %v1596 = vunpack.c.0.s8 %v1595
      %v1597 = vlaneseq
      %v1598 = vshrl.u32 %v1597, 7
      %v1599 = vsub.s32 %v1596, %v1598
      %v1600 = vrot.slane %v1586, %v1599
      %v1601 = vcombine.low %v1545, %v1577
      %v1602 = vcombine.high %v1545, %v1577
      %v1603 = vcombine.low %v1552, %v1584
      %v1604 = vcombine.high %v1552, %v1584
      %v1605 = vcombine.low %v1561, %v1593
      %v1606 = vcombine.high %v1561, %v1593
      %v1607 = vcombine.low %v1568, %v1600
      %v1608 = vcombine.high %v1568, %v1600
      %v1609 = vcombine.low %v495, %v517
      %v1610 = vcombine.high %v495, %v517
      %v1612 = vunpack.c.l.s4 1983009808
      %v1613 = vunpack.c.0.s8 %v1612
      %v1614 = vlaneseq
      %v1615 = vshrl.u32 %v1614, 7
      %v1616 = vsub.s32 %v1613, %v1615
      %v1617 = vrot.slane %v1609, %v1616
      %v1619 = vunpack.c.l.s4 1983009808
      %v1620 = vunpack.c.0.s8 %v1619
      %v1621 = vlaneseq
      %v1622 = vshrl.u32 %v1621, 7
      %v1623 = vsub.s32 %v1620, %v1622
      %v1624 = vrot.slane %v1610, %v1623
      %v1625 = vcombine.low %v506, %v528
      %v1626 = vcombine.high %v506, %v528
      %v1628 = vunpack.c.l.s4 1983009808
      %v1629 = vunpack.c.0.s8 %v1628
      %v1630 = vlaneseq
      %v1631 = vshrl.u32 %v1630, 7
      %v1632 = vsub.s32 %v1629, %v1631
      %v1633 = vrot.slane %v1625, %v1632
      %v1635 = vunpack.c.l.s4 1983009808
      %v1636 = vunpack.c.0.s8 %v1635
      %v1637 = vlaneseq
      %v1638 = vshrl.u32 %v1637, 7
      %v1639 = vsub.s32 %v1636, %v1638
      %v1640 = vrot.slane %v1626, %v1639
      %v1641 = vcombine.low %v539, %v561
      %v1642 = vcombine.high %v539, %v561
      %v1644 = vunpack.c.l.s4 1983009808
      %v1645 = vunpack.c.0.s8 %v1644
      %v1646 = vlaneseq
      %v1647 = vshrl.u32 %v1646, 7
      %v1648 = vsub.s32 %v1645, %v1647
      %v1649 = vrot.slane %v1641, %v1648
      %v1651 = vunpack.c.l.s4 1983009808
      %v1652 = vunpack.c.0.s8 %v1651
      %v1653 = vlaneseq
      %v1654 = vshrl.u32 %v1653, 7
      %v1655 = vsub.s32 %v1652, %v1654
      %v1656 = vrot.slane %v1642, %v1655
      %v1657 = vcombine.low %v550, %v572
      %v1658 = vcombine.high %v550, %v572
      %v1660 = vunpack.c.l.s4 1983009808
      %v1661 = vunpack.c.0.s8 %v1660
      %v1662 = vlaneseq
      %v1663 = vshrl.u32 %v1662, 7
      %v1664 = vsub.s32 %v1661, %v1663
      %v1665 = vrot.slane %v1657, %v1664
      %v1667 = vunpack.c.l.s4 1983009808
      %v1668 = vunpack.c.0.s8 %v1667
      %v1669 = vlaneseq
      %v1670 = vshrl.u32 %v1669, 7
      %v1671 = vsub.s32 %v1668, %v1670
      %v1672 = vrot.slane %v1658, %v1671
      %v1673 = vcombine.low %v1617, %v1633
      %v1674 = vcombine.high %v1617, %v1633
      %v1676 = vunpack.c.l.s4 1934713408
      %v1677 = vunpack.c.0.s8 %v1676
      %v1678 = vlaneseq
      %v1679 = vshrl.u32 %v1678, 7
      %v1680 = vsub.s32 %v1677, %v1679
      %v1681 = vrot.slane %v1673, %v1680
      %v1683 = vunpack.c.l.s4 1934713408
      %v1684 = vunpack.c.0.s8 %v1683
      %v1685 = vlaneseq
      %v1686 = vshrl.u32 %v1685, 7
      %v1687 = vsub.s32 %v1684, %v1686
      %v1688 = vrot.slane %v1674, %v1687
      %v1689 = vcombine.low %v1624, %v1640
      %v1690 = vcombine.high %v1624, %v1640
      %v1692 = vunpack.c.l.s4 1934713408
      %v1693 = vunpack.c.0.s8 %v1692
      %v1694 = vlaneseq
      %v1695 = vshrl.u32 %v1694, 7
      %v1696 = vsub.s32 %v1693, %v1695
      %v1697 = vrot.slane %v1689, %v1696
      %v1699 = vunpack.c.l.s4 1934713408
      %v1700 = vunpack.c.0.s8 %v1699
      %v1701 = vlaneseq
      %v1702 = vshrl.u32 %v1701, 7
      %v1703 = vsub.s32 %v1700, %v1702
      %v1704 = vrot.slane %v1690, %v1703
      %v1705 = vcombine.low %v1649, %v1665
      %v1706 = vcombine.high %v1649, %v1665
      %v1708 = vunpack.c.l.s4 1934713408
      %v1709 = vunpack.c.0.s8 %v1708
      %v1710 = vlaneseq
      %v1711 = vshrl.u32 %v1710, 7
      %v1712 = vsub.s32 %v1709, %v1711
      %v1713 = vrot.slane %v1705, %v1712
      %v1715 = vunpack.c.l.s4 1934713408
      %v1716 = vunpack.c.0.s8 %v1715
      %v1717 = vlaneseq
      %v1718 = vshrl.u32 %v1717, 7
      %v1719 = vsub.s32 %v1716, %v1718
      %v1720 = vrot.slane %v1706, %v1719
      %v1721 = vcombine.low %v1656, %v1672
      %v1722 = vcombine.high %v1656, %v1672
      %v1724 = vunpack.c.l.s4 1934713408
      %v1725 = vunpack.c.0.s8 %v1724
      %v1726 = vlaneseq
      %v1727 = vshrl.u32 %v1726, 7
      %v1728 = vsub.s32 %v1725, %v1727
      %v1729 = vrot.slane %v1721, %v1728
      %v1731 = vunpack.c.l.s4 1934713408
      %v1732 = vunpack.c.0.s8 %v1731
      %v1733 = vlaneseq
      %v1734 = vshrl.u32 %v1733, 7
      %v1735 = vsub.s32 %v1732, %v1734
      %v1736 = vrot.slane %v1722, %v1735
      %v1737 = vcombine.low %v1681, %v1713
      %v1738 = vcombine.high %v1681, %v1713
      %v1739 = vcombine.low %v1688, %v1720
      %v1740 = vcombine.high %v1688, %v1720
      %v1741 = vcombine.low %v1697, %v1729
      %v1742 = vcombine.high %v1697, %v1729
      %v1743 = vcombine.low %v1704, %v1736
      %v1744 = vcombine.high %v1704, %v1736
      %v1745 = vcombine.low %v411, %v433
      %v1746 = vcombine.high %v411, %v433
      %v1748 = vunpack.c.l.s4 1983009808
      %v1749 = vunpack.c.0.s8 %v1748
      %v1750 = vlaneseq
      %v1751 = vshrl.u32 %v1750, 7
      %v1752 = vsub.s32 %v1749, %v1751
      %v1753 = vrot.slane %v1745, %v1752
      %v1755 = vunpack.c.l.s4 1983009808
      %v1756 = vunpack.c.0.s8 %v1755
      %v1757 = vlaneseq
      %v1758 = vshrl.u32 %v1757, 7
      %v1759 = vsub.s32 %v1756, %v1758
      %v1760 = vrot.slane %v1746, %v1759
      %v1761 = vcombine.low %v422, %v444
      %v1762 = vcombine.high %v422, %v444
      %v1764 = vunpack.c.l.s4 1983009808
      %v1765 = vunpack.c.0.s8 %v1764
      %v1766 = vlaneseq
      %v1767 = vshrl.u32 %v1766, 7
      %v1768 = vsub.s32 %v1765, %v1767
      %v1769 = vrot.slane %v1761, %v1768
      %v1771 = vunpack.c.l.s4 1983009808
      %v1772 = vunpack.c.0.s8 %v1771
      %v1773 = vlaneseq
      %v1774 = vshrl.u32 %v1773, 7
      %v1775 = vsub.s32 %v1772, %v1774
      %v1776 = vrot.slane %v1762, %v1775
      %v1777 = vcombine.low %v455, %v477
      %v1778 = vcombine.high %v455, %v477
      %v1780 = vunpack.c.l.s4 1983009808
      %v1781 = vunpack.c.0.s8 %v1780
      %v1782 = vlaneseq
      %v1783 = vshrl.u32 %v1782, 7
      %v1784 = vsub.s32 %v1781, %v1783
      %v1785 = vrot.slane %v1777, %v1784
      %v1787 = vunpack.c.l.s4 1983009808
      %v1788 = vunpack.c.0.s8 %v1787
      %v1789 = vlaneseq
      %v1790 = vshrl.u32 %v1789, 7
      %v1791 = vsub.s32 %v1788, %v1790
      %v1792 = vrot.slane %v1778, %v1791
      %v1793 = vcombine.low %v466, %v488
      %v1794 = vcombine.high %v466, %v488
      %v1796 = vunpack.c.l.s4 1983009808
      %v1797 = vunpack.c.0.s8 %v1796
      %v1798 = vlaneseq
      %v1799 = vshrl.u32 %v1798, 7
      %v1800 = vsub.s32 %v1797, %v1799
      %v1801 = vrot.slane %v1793, %v1800
      %v1803 = vunpack.c.l.s4 1983009808
      %v1804 = vunpack.c.0.s8 %v1803
      %v1805 = vlaneseq
      %v1806 = vshrl.u32 %v1805, 7
      %v1807 = vsub.s32 %v1804, %v1806
      %v1808 = vrot.slane %v1794, %v1807
      %v1809 = vcombine.low %v1753, %v1769
      %v1810 = vcombine.high %v1753, %v1769
      %v1812 = vunpack.c.l.s4 1934713408
      %v1813 = vunpack.c.0.s8 %v1812
      %v1814 = vlaneseq
      %v1815 = vshrl.u32 %v1814, 7
      %v1816 = vsub.s32 %v1813, %v1815
      %v1817 = vrot.slane %v1809, %v1816
      %v1819 = vunpack.c.l.s4 1934713408
      %v1820 = vunpack.c.0.s8 %v1819
      %v1821 = vlaneseq
      %v1822 = vshrl.u32 %v1821, 7
      %v1823 = vsub.s32 %v1820, %v1822
      %v1824 = vrot.slane %v1810, %v1823
      %v1825 = vcombine.low %v1760, %v1776
      %v1826 = vcombine.high %v1760, %v1776
      %v1828 = vunpack.c.l.s4 1934713408
      %v1829 = vunpack.c.0.s8 %v1828
      %v1830 = vlaneseq
      %v1831 = vshrl.u32 %v1830, 7
      %v1832 = vsub.s32 %v1829, %v1831
      %v1833 = vrot.slane %v1825, %v1832
      %v1835 = vunpack.c.l.s4 1934713408
      %v1836 = vunpack.c.0.s8 %v1835
      %v1837 = vlaneseq
      %v1838 = vshrl.u32 %v1837, 7
      %v1839 = vsub.s32 %v1836, %v1838
      %v1840 = vrot.slane %v1826, %v1839
      %v1841 = vcombine.low %v1785, %v1801
      %v1842 = vcombine.high %v1785, %v1801
      %v1844 = vunpack.c.l.s4 1934713408
      %v1845 = vunpack.c.0.s8 %v1844
      %v1846 = vlaneseq
      %v1847 = vshrl.u32 %v1846, 7
      %v1848 = vsub.s32 %v1845, %v1847
      %v1849 = vrot.slane %v1841, %v1848
      %v1851 = vunpack.c.l.s4 1934713408
      %v1852 = vunpack.c.0.s8 %v1851
      %v1853 = vlaneseq
      %v1854 = vshrl.u32 %v1853, 7
      %v1855 = vsub.s32 %v1852, %v1854
      %v1856 = vrot.slane %v1842, %v1855
      %v1857 = vcombine.low %v1792, %v1808
      %v1858 = vcombine.high %v1792, %v1808
      %v1860 = vunpack.c.l.s4 1934713408
      %v1861 = vunpack.c.0.s8 %v1860
      %v1862 = vlaneseq
      %v1863 = vshrl.u32 %v1862, 7
      %v1864 = vsub.s32 %v1861, %v1863
      %v1865 = vrot.slane %v1857, %v1864
      %v1867 = vunpack.c.l.s4 1934713408
      %v1868 = vunpack.c.0.s8 %v1867
      %v1869 = vlaneseq
      %v1870 = vshrl.u32 %v1869, 7
      %v1871 = vsub.s32 %v1868, %v1870
      %v1872 = vrot.slane %v1858, %v1871
      %v1873 = vcombine.low %v1817, %v1849
      %v1874 = vcombine.high %v1817, %v1849
      %v1875 = vcombine.low %v1824, %v1856
      %v1876 = vcombine.high %v1824, %v1856
      %v1877 = vcombine.low %v1833, %v1865
      %v1878 = vcombine.high %v1833, %v1865
      %v1879 = vcombine.low %v1840, %v1872
      %v1880 = vcombine.high %v1840, %v1872
      %v1881 = vcombine.low %v499, %v521
      %v1882 = vcombine.high %v499, %v521
      %v1884 = vunpack.c.l.s4 1983009808
      %v1885 = vunpack.c.0.s8 %v1884
      %v1886 = vlaneseq
      %v1887 = vshrl.u32 %v1886, 7
      %v1888 = vsub.s32 %v1885, %v1887
      %v1889 = vrot.slane %v1881, %v1888
      %v1891 = vunpack.c.l.s4 1983009808
      %v1892 = vunpack.c.0.s8 %v1891
      %v1893 = vlaneseq
      %v1894 = vshrl.u32 %v1893, 7
      %v1895 = vsub.s32 %v1892, %v1894
      %v1896 = vrot.slane %v1882, %v1895
      %v1897 = vcombine.low %v510, %v532
      %v1898 = vcombine.high %v510, %v532
      %v1900 = vunpack.c.l.s4 1983009808
      %v1901 = vunpack.c.0.s8 %v1900
      %v1902 = vlaneseq
      %v1903 = vshrl.u32 %v1902, 7
      %v1904 = vsub.s32 %v1901, %v1903
      %v1905 = vrot.slane %v1897, %v1904
      %v1907 = vunpack.c.l.s4 1983009808
      %v1908 = vunpack.c.0.s8 %v1907
      %v1909 = vlaneseq
      %v1910 = vshrl.u32 %v1909, 7
      %v1911 = vsub.s32 %v1908, %v1910
      %v1912 = vrot.slane %v1898, %v1911
      %v1913 = vcombine.low %v543, %v565
      %v1914 = vcombine.high %v543, %v565
      %v1916 = vunpack.c.l.s4 1983009808
      %v1917 = vunpack.c.0.s8 %v1916
      %v1918 = vlaneseq
      %v1919 = vshrl.u32 %v1918, 7
      %v1920 = vsub.s32 %v1917, %v1919
      %v1921 = vrot.slane %v1913, %v1920
      %v1923 = vunpack.c.l.s4 1983009808
      %v1924 = vunpack.c.0.s8 %v1923
      %v1925 = vlaneseq
      %v1926 = vshrl.u32 %v1925, 7
      %v1927 = vsub.s32 %v1924, %v1926
      %v1928 = vrot.slane %v1914, %v1927
      %v1929 = vcombine.low %v554, %v576
      %v1930 = vcombine.high %v554, %v576
      %v1932 = vunpack.c.l.s4 1983009808
      %v1933 = vunpack.c.0.s8 %v1932
      %v1934 = vlaneseq
      %v1935 = vshrl.u32 %v1934, 7
      %v1936 = vsub.s32 %v1933, %v1935
      %v1937 = vrot.slane %v1929, %v1936
      %v1939 = vunpack.c.l.s4 1983009808
      %v1940 = vunpack.c.0.s8 %v1939
      %v1941 = vlaneseq
      %v1942 = vshrl.u32 %v1941, 7
      %v1943 = vsub.s32 %v1940, %v1942
      %v1944 = vrot.slane %v1930, %v1943
      %v1945 = vcombine.low %v1889, %v1905
      %v1946 = vcombine.high %v1889, %v1905
      %v1948 = vunpack.c.l.s4 1934713408
      %v1949 = vunpack.c.0.s8 %v1948
      %v1950 = vlaneseq
      %v1951 = vshrl.u32 %v1950, 7
      %v1952 = vsub.s32 %v1949, %v1951
      %v1953 = vrot.slane %v1945, %v1952
      %v1955 = vunpack.c.l.s4 1934713408
      %v1956 = vunpack.c.0.s8 %v1955
      %v1957 = vlaneseq
      %v1958 = vshrl.u32 %v1957, 7
      %v1959 = vsub.s32 %v1956, %v1958
      %v1960 = vrot.slane %v1946, %v1959
      %v1961 = vcombine.low %v1896, %v1912
      %v1962 = vcombine.high %v1896, %v1912
      %v1964 = vunpack.c.l.s4 1934713408
      %v1965 = vunpack.c.0.s8 %v1964
      %v1966 = vlaneseq
      %v1967 = vshrl.u32 %v1966, 7
      %v1968 = vsub.s32 %v1965, %v1967
      %v1969 = vrot.slane %v1961, %v1968
      %v1971 = vunpack.c.l.s4 1934713408
      %v1972 = vunpack.c.0.s8 %v1971
      %v1973 = vlaneseq
      %v1974 = vshrl.u32 %v1973, 7
      %v1975 = vsub.s32 %v1972, %v1974
      %v1976 = vrot.slane %v1962, %v1975
      %v1977 = vcombine.low %v1921, %v1937
      %v1978 = vcombine.high %v1921, %v1937
      %v1980 = vunpack.c.l.s4 1934713408
      %v1981 = vunpack.c.0.s8 %v1980
      %v1982 = vlaneseq
      %v1983 = vshrl.u32 %v1982, 7
      %v1984 = vsub.s32 %v1981, %v1983
      %v1985 = vrot.slane %v1977, %v1984
      %v1987 = vunpack.c.l.s4 1934713408
      %v1988 = vunpack.c.0.s8 %v1987
      %v1989 = vlaneseq
      %v1990 = vshrl.u32 %v1989, 7
      %v1991 = vsub.s32 %v1988, %v1990
      %v1992 = vrot.slane %v1978, %v1991
      %v1993 = vcombine.low %v1928, %v1944
      %v1994 = vcombine.high %v1928, %v1944
      %v1996 = vunpack.c.l.s4 1934713408
      %v1997 = vunpack.c.0.s8 %v1996
      %v1998 = vlaneseq
      %v1999 = vshrl.u32 %v1998, 7
      %v2000 = vsub.s32 %v1997, %v1999
      %v2001 = vrot.slane %v1993, %v2000
      %v2003 = vunpack.c.l.s4 1934713408
      %v2004 = vunpack.c.0.s8 %v2003
      %v2005 = vlaneseq
      %v2006 = vshrl.u32 %v2005, 7
      %v2007 = vsub.s32 %v2004, %v2006
      %v2008 = vrot.slane %v1994, %v2007
      %v2009 = vcombine.low %v1953, %v1985
      %v2010 = vcombine.high %v1953, %v1985
      %v2011 = vcombine.low %v1960, %v1992
      %v2012 = vcombine.high %v1960, %v1992
      %v2013 = vcombine.low %v1969, %v2001
      %v2014 = vcombine.high %v1969, %v2001
      %v2015 = vcombine.low %v1976, %v2008
      %v2016 = vcombine.high %v1976, %v2008
      %v2017 = vcombine.low %v583, %v605
      %v2018 = vcombine.high %v583, %v605
      %v2020 = vunpack.c.l.s4 1983009808
      %v2021 = vunpack.c.0.s8 %v2020
      %v2022 = vlaneseq
      %v2023 = vshrl.u32 %v2022, 7
      %v2024 = vsub.s32 %v2021, %v2023
      %v2025 = vrot.slane %v2017, %v2024
      %v2027 = vunpack.c.l.s4 1983009808
      %v2028 = vunpack.c.0.s8 %v2027
      %v2029 = vlaneseq
      %v2030 = vshrl.u32 %v2029, 7
      %v2031 = vsub.s32 %v2028, %v2030
      %v2032 = vrot.slane %v2018, %v2031
      %v2033 = vcombine.low %v594, %v616
      %v2034 = vcombine.high %v594, %v616
      %v2036 = vunpack.c.l.s4 1983009808
      %v2037 = vunpack.c.0.s8 %v2036
      %v2038 = vlaneseq
      %v2039 = vshrl.u32 %v2038, 7
      %v2040 = vsub.s32 %v2037, %v2039
      %v2041 = vrot.slane %v2033, %v2040
      %v2043 = vunpack.c.l.s4 1983009808
      %v2044 = vunpack.c.0.s8 %v2043
      %v2045 = vlaneseq
      %v2046 = vshrl.u32 %v2045, 7
      %v2047 = vsub.s32 %v2044, %v2046
      %v2048 = vrot.slane %v2034, %v2047
      %v2049 = vcombine.low %v627, %v649
      %v2050 = vcombine.high %v627, %v649
      %v2052 = vunpack.c.l.s4 1983009808
      %v2053 = vunpack.c.0.s8 %v2052
      %v2054 = vlaneseq
      %v2055 = vshrl.u32 %v2054, 7
      %v2056 = vsub.s32 %v2053, %v2055
      %v2057 = vrot.slane %v2049, %v2056
      %v2059 = vunpack.c.l.s4 1983009808
      %v2060 = vunpack.c.0.s8 %v2059
      %v2061 = vlaneseq
      %v2062 = vshrl.u32 %v2061, 7
      %v2063 = vsub.s32 %v2060, %v2062
      %v2064 = vrot.slane %v2050, %v2063
      %v2065 = vcombine.low %v638, %v660
      %v2066 = vcombine.high %v638, %v660
      %v2068 = vunpack.c.l.s4 1983009808
      %v2069 = vunpack.c.0.s8 %v2068
      %v2070 = vlaneseq
      %v2071 = vshrl.u32 %v2070, 7
      %v2072 = vsub.s32 %v2069, %v2071
      %v2073 = vrot.slane %v2065, %v2072
      %v2075 = vunpack.c.l.s4 1983009808
      %v2076 = vunpack.c.0.s8 %v2075
      %v2077 = vlaneseq
      %v2078 = vshrl.u32 %v2077, 7
      %v2079 = vsub.s32 %v2076, %v2078
      %v2080 = vrot.slane %v2066, %v2079
      %v2081 = vcombine.low %v2025, %v2041
      %v2082 = vcombine.high %v2025, %v2041
      %v2084 = vunpack.c.l.s4 1934713408
      %v2085 = vunpack.c.0.s8 %v2084
      %v2086 = vlaneseq
      %v2087 = vshrl.u32 %v2086, 7
      %v2088 = vsub.s32 %v2085, %v2087
      %v2089 = vrot.slane %v2081, %v2088
      %v2091 = vunpack.c.l.s4 1934713408
      %v2092 = vunpack.c.0.s8 %v2091
      %v2093 = vlaneseq
      %v2094 = vshrl.u32 %v2093, 7
      %v2095 = vsub.s32 %v2092, %v2094
      %v2096 = vrot.slane %v2082, %v2095
      %v2097 = vcombine.low %v2032, %v2048
      %v2098 = vcombine.high %v2032, %v2048
      %v2100 = vunpack.c.l.s4 1934713408
      %v2101 = vunpack.c.0.s8 %v2100
      %v2102 = vlaneseq
      %v2103 = vshrl.u32 %v2102, 7
      %v2104 = vsub.s32 %v2101, %v2103
      %v2105 = vrot.slane %v2097, %v2104
      %v2107 = vunpack.c.l.s4 1934713408
      %v2108 = vunpack.c.0.s8 %v2107
      %v2109 = vlaneseq
      %v2110 = vshrl.u32 %v2109, 7
      %v2111 = vsub.s32 %v2108, %v2110
      %v2112 = vrot.slane %v2098, %v2111
      %v2113 = vcombine.low %v2057, %v2073
      %v2114 = vcombine.high %v2057, %v2073
      %v2116 = vunpack.c.l.s4 1934713408
      %v2117 = vunpack.c.0.s8 %v2116
      %v2118 = vlaneseq
      %v2119 = vshrl.u32 %v2118, 7
      %v2120 = vsub.s32 %v2117, %v2119
      %v2121 = vrot.slane %v2113, %v2120
      %v2123 = vunpack.c.l.s4 1934713408
      %v2124 = vunpack.c.0.s8 %v2123
      %v2125 = vlaneseq
      %v2126 = vshrl.u32 %v2125, 7
      %v2127 = vsub.s32 %v2124, %v2126
      %v2128 = vrot.slane %v2114, %v2127
      %v2129 = vcombine.low %v2064, %v2080
      %v2130 = vcombine.high %v2064, %v2080
      %v2132 = vunpack.c.l.s4 1934713408
      %v2133 = vunpack.c.0.s8 %v2132
      %v2134 = vlaneseq
      %v2135 = vshrl.u32 %v2134, 7
      %v2136 = vsub.s32 %v2133, %v2135
      %v2137 = vrot.slane %v2129, %v2136
      %v2139 = vunpack.c.l.s4 1934713408
      %v2140 = vunpack.c.0.s8 %v2139
      %v2141 = vlaneseq
      %v2142 = vshrl.u32 %v2141, 7
      %v2143 = vsub.s32 %v2140, %v2142
      %v2144 = vrot.slane %v2130, %v2143
      %v2145 = vcombine.low %v2089, %v2121
      %v2146 = vcombine.high %v2089, %v2121
      %v2147 = vcombine.low %v2096, %v2128
      %v2148 = vcombine.high %v2096, %v2128
      %v2149 = vcombine.low %v2105, %v2137
      %v2150 = vcombine.high %v2105, %v2137
      %v2151 = vcombine.low %v2112, %v2144
      %v2152 = vcombine.high %v2112, %v2144
      %v2153 = vcombine.low %v671, %v693
      %v2154 = vcombine.high %v671, %v693
      %v2156 = vunpack.c.l.s4 1983009808
      %v2157 = vunpack.c.0.s8 %v2156
      %v2158 = vlaneseq
      %v2159 = vshrl.u32 %v2158, 7
      %v2160 = vsub.s32 %v2157, %v2159
      %v2161 = vrot.slane %v2153, %v2160
      %v2163 = vunpack.c.l.s4 1983009808
      %v2164 = vunpack.c.0.s8 %v2163
      %v2165 = vlaneseq
      %v2166 = vshrl.u32 %v2165, 7
      %v2167 = vsub.s32 %v2164, %v2166
      %v2168 = vrot.slane %v2154, %v2167
      %v2169 = vcombine.low %v682, %v704
      %v2170 = vcombine.high %v682, %v704
      %v2172 = vunpack.c.l.s4 1983009808
      %v2173 = vunpack.c.0.s8 %v2172
      %v2174 = vlaneseq
      %v2175 = vshrl.u32 %v2174, 7
      %v2176 = vsub.s32 %v2173, %v2175
      %v2177 = vrot.slane %v2169, %v2176
      %v2179 = vunpack.c.l.s4 1983009808
      %v2180 = vunpack.c.0.s8 %v2179
      %v2181 = vlaneseq
      %v2182 = vshrl.u32 %v2181, 7
      %v2183 = vsub.s32 %v2180, %v2182
      %v2184 = vrot.slane %v2170, %v2183
      %v2185 = vcombine.low %v715, %v737
      %v2186 = vcombine.high %v715, %v737
      %v2188 = vunpack.c.l.s4 1983009808
      %v2189 = vunpack.c.0.s8 %v2188
      %v2190 = vlaneseq
      %v2191 = vshrl.u32 %v2190, 7
      %v2192 = vsub.s32 %v2189, %v2191
      %v2193 = vrot.slane %v2185, %v2192
      %v2195 = vunpack.c.l.s4 1983009808
      %v2196 = vunpack.c.0.s8 %v2195
      %v2197 = vlaneseq
      %v2198 = vshrl.u32 %v2197, 7
      %v2199 = vsub.s32 %v2196, %v2198
      %v2200 = vrot.slane %v2186, %v2199
      %v2201 = vcombine.low %v726, %v748
      %v2202 = vcombine.high %v726, %v748
      %v2204 = vunpack.c.l.s4 1983009808
      %v2205 = vunpack.c.0.s8 %v2204
      %v2206 = vlaneseq
      %v2207 = vshrl.u32 %v2206, 7
      %v2208 = vsub.s32 %v2205, %v2207
      %v2209 = vrot.slane %v2201, %v2208
      %v2211 = vunpack.c.l.s4 1983009808
      %v2212 = vunpack.c.0.s8 %v2211
      %v2213 = vlaneseq
      %v2214 = vshrl.u32 %v2213, 7
      %v2215 = vsub.s32 %v2212, %v2214
      %v2216 = vrot.slane %v2202, %v2215
      %v2217 = vcombine.low %v2161, %v2177
      %v2218 = vcombine.high %v2161, %v2177
      %v2220 = vunpack.c.l.s4 1934713408
      %v2221 = vunpack.c.0.s8 %v2220
      %v2222 = vlaneseq
      %v2223 = vshrl.u32 %v2222, 7
      %v2224 = vsub.s32 %v2221, %v2223
      %v2225 = vrot.slane %v2217, %v2224
      %v2227 = vunpack.c.l.s4 1934713408
      %v2228 = vunpack.c.0.s8 %v2227
      %v2229 = vlaneseq
      %v2230 = vshrl.u32 %v2229, 7
      %v2231 = vsub.s32 %v2228, %v2230
      %v2232 = vrot.slane %v2218, %v2231
      %v2233 = vcombine.low %v2168, %v2184
      %v2234 = vcombine.high %v2168, %v2184
      %v2236 = vunpack.c.l.s4 1934713408
      %v2237 = vunpack.c.0.s8 %v2236
      %v2238 = vlaneseq
      %v2239 = vshrl.u32 %v2238, 7
      %v2240 = vsub.s32 %v2237, %v2239
      %v2241 = vrot.slane %v2233, %v2240
      %v2243 = vunpack.c.l.s4 1934713408
      %v2244 = vunpack.c.0.s8 %v2243
      %v2245 = vlaneseq
      %v2246 = vshrl.u32 %v2245, 7
      %v2247 = vsub.s32 %v2244, %v2246
      %v2248 = vrot.slane %v2234, %v2247
      %v2249 = vcombine.low %v2193, %v2209
      %v2250 = vcombine.high %v2193, %v2209
      %v2252 = vunpack.c.l.s4 1934713408
      %v2253 = vunpack.c.0.s8 %v2252
      %v2254 = vlaneseq
      %v2255 = vshrl.u32 %v2254, 7
      %v2256 = vsub.s32 %v2253, %v2255
      %v2257 = vrot.slane %v2249, %v2256
      %v2259 = vunpack.c.l.s4 1934713408
      %v2260 = vunpack.c.0.s8 %v2259
      %v2261 = vlaneseq
      %v2262 = vshrl.u32 %v2261, 7
      %v2263 = vsub.s32 %v2260, %v2262
      %v2264 = vrot.slane %v2250, %v2263
      %v2265 = vcombine.low %v2200, %v2216
      %v2266 = vcombine.high %v2200, %v2216
      %v2268 = vunpack.c.l.s4 1934713408
      %v2269 = vunpack.c.0.s8 %v2268
      %v2270 = vlaneseq
      %v2271 = vshrl.u32 %v2270, 7
      %v2272 = vsub.s32 %v2269, %v2271
      %v2273 = vrot.slane %v2265, %v2272
      %v2275 = vunpack.c.l.s4 1934713408
      %v2276 = vunpack.c.0.s8 %v2275
      %v2277 = vlaneseq
      %v2278 = vshrl.u32 %v2277, 7
      %v2279 = vsub.s32 %v2276, %v2278
      %v2280 = vrot.slane %v2266, %v2279
      %v2281 = vcombine.low %v2225, %v2257
      %v2282 = vcombine.high %v2225, %v2257
      %v2283 = vcombine.low %v2232, %v2264
      %v2284 = vcombine.high %v2232, %v2264
      %v2285 = vcombine.low %v2241, %v2273
      %v2286 = vcombine.high %v2241, %v2273
      %v2287 = vcombine.low %v2248, %v2280
      %v2288 = vcombine.high %v2248, %v2280
      %v2289 = vcombine.low %v587, %v609
      %v2290 = vcombine.high %v587, %v609
      %v2292 = vunpack.c.l.s4 1983009808
      %v2293 = vunpack.c.0.s8 %v2292
      %v2294 = vlaneseq
      %v2295 = vshrl.u32 %v2294, 7
      %v2296 = vsub.s32 %v2293, %v2295
      %v2297 = vrot.slane %v2289, %v2296
      %v2299 = vunpack.c.l.s4 1983009808
      %v2300 = vunpack.c.0.s8 %v2299
      %v2301 = vlaneseq
      %v2302 = vshrl.u32 %v2301, 7
      %v2303 = vsub.s32 %v2300, %v2302
      %v2304 = vrot.slane %v2290, %v2303
      %v2305 = vcombine.low %v598, %v620
      %v2306 = vcombine.high %v598, %v620
      %v2308 = vunpack.c.l.s4 1983009808
      %v2309 = vunpack.c.0.s8 %v2308
      %v2310 = vlaneseq
      %v2311 = vshrl.u32 %v2310, 7
      %v2312 = vsub.s32 %v2309, %v2311
      %v2313 = vrot.slane %v2305, %v2312
      %v2315 = vunpack.c.l.s4 1983009808
      %v2316 = vunpack.c.0.s8 %v2315
      %v2317 = vlaneseq
      %v2318 = vshrl.u32 %v2317, 7
      %v2319 = vsub.s32 %v2316, %v2318
      %v2320 = vrot.slane %v2306, %v2319
      %v2321 = vcombine.low %v631, %v653
      %v2322 = vcombine.high %v631, %v653
      %v2324 = vunpack.c.l.s4 1983009808
      %v2325 = vunpack.c.0.s8 %v2324
      %v2326 = vlaneseq
      %v2327 = vshrl.u32 %v2326, 7
      %v2328 = vsub.s32 %v2325, %v2327
      %v2329 = vrot.slane %v2321, %v2328
      %v2331 = vunpack.c.l.s4 1983009808
      %v2332 = vunpack.c.0.s8 %v2331
      %v2333 = vlaneseq
      %v2334 = vshrl.u32 %v2333, 7
      %v2335 = vsub.s32 %v2332, %v2334
      %v2336 = vrot.slane %v2322, %v2335
      %v2337 = vcombine.low %v642, %v664
      %v2338 = vcombine.high %v642, %v664
      %v2340 = vunpack.c.l.s4 1983009808
      %v2341 = vunpack.c.0.s8 %v2340
      %v2342 = vlaneseq
      %v2343 = vshrl.u32 %v2342, 7
      %v2344 = vsub.s32 %v2341, %v2343
      %v2345 = vrot.slane %v2337, %v2344
      %v2347 = vunpack.c.l.s4 1983009808
      %v2348 = vunpack.c.0.s8 %v2347
      %v2349 = vlaneseq
      %v2350 = vshrl.u32 %v2349, 7
      %v2351 = vsub.s32 %v2348, %v2350
      %v2352 = vrot.slane %v2338, %v2351
      %v2353 = vcombine.low %v2297, %v2313
      %v2354 = vcombine.high %v2297, %v2313
      %v2356 = vunpack.c.l.s4 1934713408
      %v2357 = vunpack.c.0.s8 %v2356
      %v2358 = vlaneseq
      %v2359 = vshrl.u32 %v2358, 7
      %v2360 = vsub.s32 %v2357, %v2359
      %v2361 = vrot.slane %v2353, %v2360
      %v2363 = vunpack.c.l.s4 1934713408
      %v2364 = vunpack.c.0.s8 %v2363
      %v2365 = vlaneseq
      %v2366 = vshrl.u32 %v2365, 7
      %v2367 = vsub.s32 %v2364, %v2366
      %v2368 = vrot.slane %v2354, %v2367
      %v2369 = vcombine.low %v2304, %v2320
      %v2370 = vcombine.high %v2304, %v2320
      %v2372 = vunpack.c.l.s4 1934713408
      %v2373 = vunpack.c.0.s8 %v2372
      %v2374 = vlaneseq
      %v2375 = vshrl.u32 %v2374, 7
      %v2376 = vsub.s32 %v2373, %v2375
      %v2377 = vrot.slane %v2369, %v2376
      %v2379 = vunpack.c.l.s4 1934713408
      %v2380 = vunpack.c.0.s8 %v2379
      %v2381 = vlaneseq
      %v2382 = vshrl.u32 %v2381, 7
      %v2383 = vsub.s32 %v2380, %v2382
      %v2384 = vrot.slane %v2370, %v2383
      %v2385 = vcombine.low %v2329, %v2345
      %v2386 = vcombine.high %v2329, %v2345
      %v2388 = vunpack.c.l.s4 1934713408
      %v2389 = vunpack.c.0.s8 %v2388
      %v2390 = vlaneseq
      %v2391 = vshrl.u32 %v2390, 7
      %v2392 = vsub.s32 %v2389, %v2391
      %v2393 = vrot.slane %v2385, %v2392
      %v2395 = vunpack.c.l.s4 1934713408
      %v2396 = vunpack.c.0.s8 %v2395
      %v2397 = vlaneseq
      %v2398 = vshrl.u32 %v2397, 7
      %v2399 = vsub.s32 %v2396, %v2398
      %v2400 = vrot.slane %v2386, %v2399
      %v2401 = vcombine.low %v2336, %v2352
      %v2402 = vcombine.high %v2336, %v2352
      %v2404 = vunpack.c.l.s4 1934713408
      %v2405 = vunpack.c.0.s8 %v2404
      %v2406 = vlaneseq
      %v2407 = vshrl.u32 %v2406, 7
      %v2408 = vsub.s32 %v2405, %v2407
      %v2409 = vrot.slane %v2401, %v2408
      %v2411 = vunpack.c.l.s4 1934713408
      %v2412 = vunpack.c.0.s8 %v2411
      %v2413 = vlaneseq
      %v2414 = vshrl.u32 %v2413, 7
      %v2415 = vsub.s32 %v2412, %v2414
      %v2416 = vrot.slane %v2402, %v2415
      %v2417 = vcombine.low %v2361, %v2393
      %v2418 = vcombine.high %v2361, %v2393
      %v2419 = vcombine.low %v2368, %v2400
      %v2420 = vcombine.high %v2368, %v2400
      %v2421 = vcombine.low %v2377, %v2409
      %v2422 = vcombine.high %v2377, %v2409
      %v2423 = vcombine.low %v2384, %v2416
      %v2424 = vcombine.high %v2384, %v2416
      %v2425 = vcombine.low %v675, %v697
      %v2426 = vcombine.high %v675, %v697
      %v2428 = vunpack.c.l.s4 1983009808
      %v2429 = vunpack.c.0.s8 %v2428
      %v2430 = vlaneseq
      %v2431 = vshrl.u32 %v2430, 7
      %v2432 = vsub.s32 %v2429, %v2431
      %v2433 = vrot.slane %v2425, %v2432
      %v2435 = vunpack.c.l.s4 1983009808
      %v2436 = vunpack.c.0.s8 %v2435
      %v2437 = vlaneseq
      %v2438 = vshrl.u32 %v2437, 7
      %v2439 = vsub.s32 %v2436, %v2438
      %v2440 = vrot.slane %v2426, %v2439
      %v2441 = vcombine.low %v686, %v708
      %v2442 = vcombine.high %v686, %v708
      %v2444 = vunpack.c.l.s4 1983009808
      %v2445 = vunpack.c.0.s8 %v2444
      %v2446 = vlaneseq
      %v2447 = vshrl.u32 %v2446, 7
      %v2448 = vsub.s32 %v2445, %v2447
      %v2449 = vrot.slane %v2441, %v2448
      %v2451 = vunpack.c.l.s4 1983009808
      %v2452 = vunpack.c.0.s8 %v2451
      %v2453 = vlaneseq
      %v2454 = vshrl.u32 %v2453, 7
      %v2455 = vsub.s32 %v2452, %v2454
      %v2456 = vrot.slane %v2442, %v2455
      %v2457 = vcombine.low %v719, %v741
      %v2458 = vcombine.high %v719, %v741
      %v2460 = vunpack.c.l.s4 1983009808
      %v2461 = vunpack.c.0.s8 %v2460
      %v2462 = vlaneseq
      %v2463 = vshrl.u32 %v2462, 7
      %v2464 = vsub.s32 %v2461, %v2463
      %v2465 = vrot.slane %v2457, %v2464
      %v2467 = vunpack.c.l.s4 1983009808
      %v2468 = vunpack.c.0.s8 %v2467
      %v2469 = vlaneseq
      %v2470 = vshrl.u32 %v2469, 7
      %v2471 = vsub.s32 %v2468, %v2470
      %v2472 = vrot.slane %v2458, %v2471
      %v2473 = vcombine.low %v730, %v752
      %v2474 = vcombine.high %v730, %v752
      %v2476 = vunpack.c.l.s4 1983009808
      %v2477 = vunpack.c.0.s8 %v2476
      %v2478 = vlaneseq
      %v2479 = vshrl.u32 %v2478, 7
      %v2480 = vsub.s32 %v2477, %v2479
      %v2481 = vrot.slane %v2473, %v2480
      %v2483 = vunpack.c.l.s4 1983009808
      %v2484 = vunpack.c.0.s8 %v2483
      %v2485 = vlaneseq
      %v2486 = vshrl.u32 %v2485, 7
      %v2487 = vsub.s32 %v2484, %v2486
      %v2488 = vrot.slane %v2474, %v2487
      %v2489 = vcombine.low %v2433, %v2449
      %v2490 = vcombine.high %v2433, %v2449
      %v2492 = vunpack.c.l.s4 1934713408
      %v2493 = vunpack.c.0.s8 %v2492
      %v2494 = vlaneseq
      %v2495 = vshrl.u32 %v2494, 7
      %v2496 = vsub.s32 %v2493, %v2495
      %v2497 = vrot.slane %v2489, %v2496
      %v2499 = vunpack.c.l.s4 1934713408
      %v2500 = vunpack.c.0.s8 %v2499
      %v2501 = vlaneseq
      %v2502 = vshrl.u32 %v2501, 7
      %v2503 = vsub.s32 %v2500, %v2502
      %v2504 = vrot.slane %v2490, %v2503
      %v2505 = vcombine.low %v2440, %v2456
      %v2506 = vcombine.high %v2440, %v2456
      %v2508 = vunpack.c.l.s4 1934713408
      %v2509 = vunpack.c.0.s8 %v2508
      %v2510 = vlaneseq
      %v2511 = vshrl.u32 %v2510, 7
      %v2512 = vsub.s32 %v2509, %v2511
      %v2513 = vrot.slane %v2505, %v2512
      %v2515 = vunpack.c.l.s4 1934713408
      %v2516 = vunpack.c.0.s8 %v2515
      %v2517 = vlaneseq
      %v2518 = vshrl.u32 %v2517, 7
      %v2519 = vsub.s32 %v2516, %v2518
      %v2520 = vrot.slane %v2506, %v2519
      %v2521 = vcombine.low %v2465, %v2481
      %v2522 = vcombine.high %v2465, %v2481
      %v2524 = vunpack.c.l.s4 1934713408
      %v2525 = vunpack.c.0.s8 %v2524
      %v2526 = vlaneseq
      %v2527 = vshrl.u32 %v2526, 7
      %v2528 = vsub.s32 %v2525, %v2527
      %v2529 = vrot.slane %v2521, %v2528
      %v2531 = vunpack.c.l.s4 1934713408
      %v2532 = vunpack.c.0.s8 %v2531
      %v2533 = vlaneseq
      %v2534 = vshrl.u32 %v2533, 7
      %v2535 = vsub.s32 %v2532, %v2534
      %v2536 = vrot.slane %v2522, %v2535
      %v2537 = vcombine.low %v2472, %v2488
      %v2538 = vcombine.high %v2472, %v2488
      %v2540 = vunpack.c.l.s4 1934713408
      %v2541 = vunpack.c.0.s8 %v2540
      %v2542 = vlaneseq
      %v2543 = vshrl.u32 %v2542, 7
      %v2544 = vsub.s32 %v2541, %v2543
      %v2545 = vrot.slane %v2537, %v2544
      %v2547 = vunpack.c.l.s4 1934713408
      %v2548 = vunpack.c.0.s8 %v2547
      %v2549 = vlaneseq
      %v2550 = vshrl.u32 %v2549, 7
      %v2551 = vsub.s32 %v2548, %v2550
      %v2552 = vrot.slane %v2538, %v2551
      %v2553 = vcombine.low %v2497, %v2529
      %v2554 = vcombine.high %v2497, %v2529
      %v2555 = vcombine.low %v2504, %v2536
      %v2556 = vcombine.high %v2504, %v2536
      %v2557 = vcombine.low %v2513, %v2545
      %v2558 = vcombine.high %v2513, %v2545
      %v2559 = vcombine.low %v2520, %v2552
      %v2560 = vcombine.high %v2520, %v2552
      %v2561 = vcombine.low %v759, %v781
      %v2562 = vcombine.high %v759, %v781
      %v2564 = vunpack.c.l.s4 1983009808
      %v2565 = vunpack.c.0.s8 %v2564
      %v2566 = vlaneseq
      %v2567 = vshrl.u32 %v2566, 7
      %v2568 = vsub.s32 %v2565, %v2567
      %v2569 = vrot.slane %v2561, %v2568
      %v2571 = vunpack.c.l.s4 1983009808
      %v2572 = vunpack.c.0.s8 %v2571
      %v2573 = vlaneseq
      %v2574 = vshrl.u32 %v2573, 7
      %v2575 = vsub.s32 %v2572, %v2574
      %v2576 = vrot.slane %v2562, %v2575
      %v2577 = vcombine.low %v770, %v792
      %v2578 = vcombine.high %v770, %v792
      %v2580 = vunpack.c.l.s4 1983009808
      %v2581 = vunpack.c.0.s8 %v2580
      %v2582 = vlaneseq
      %v2583 = vshrl.u32 %v2582, 7
      %v2584 = vsub.s32 %v2581, %v2583
      %v2585 = vrot.slane %v2577, %v2584
      %v2587 = vunpack.c.l.s4 1983009808
      %v2588 = vunpack.c.0.s8 %v2587
      %v2589 = vlaneseq
      %v2590 = vshrl.u32 %v2589, 7
      %v2591 = vsub.s32 %v2588, %v2590
      %v2592 = vrot.slane %v2578, %v2591
      %v2593 = vcombine.low %v803, %v825
      %v2594 = vcombine.high %v803, %v825
      %v2596 = vunpack.c.l.s4 1983009808
      %v2597 = vunpack.c.0.s8 %v2596
      %v2598 = vlaneseq
      %v2599 = vshrl.u32 %v2598, 7
      %v2600 = vsub.s32 %v2597, %v2599
      %v2601 = vrot.slane %v2593, %v2600
      %v2603 = vunpack.c.l.s4 1983009808
      %v2604 = vunpack.c.0.s8 %v2603
      %v2605 = vlaneseq
      %v2606 = vshrl.u32 %v2605, 7
      %v2607 = vsub.s32 %v2604, %v2606
      %v2608 = vrot.slane %v2594, %v2607
      %v2609 = vcombine.low %v814, %v836
      %v2610 = vcombine.high %v814, %v836
      %v2612 = vunpack.c.l.s4 1983009808
      %v2613 = vunpack.c.0.s8 %v2612
      %v2614 = vlaneseq
      %v2615 = vshrl.u32 %v2614, 7
      %v2616 = vsub.s32 %v2613, %v2615
      %v2617 = vrot.slane %v2609, %v2616
      %v2619 = vunpack.c.l.s4 1983009808
      %v2620 = vunpack.c.0.s8 %v2619
      %v2621 = vlaneseq
      %v2622 = vshrl.u32 %v2621, 7
      %v2623 = vsub.s32 %v2620, %v2622
      %v2624 = vrot.slane %v2610, %v2623
      %v2625 = vcombine.low %v2569, %v2585
      %v2626 = vcombine.high %v2569, %v2585
      %v2628 = vunpack.c.l.s4 1934713408
      %v2629 = vunpack.c.0.s8 %v2628
      %v2630 = vlaneseq
      %v2631 = vshrl.u32 %v2630, 7
      %v2632 = vsub.s32 %v2629, %v2631
      %v2633 = vrot.slane %v2625, %v2632
      %v2635 = vunpack.c.l.s4 1934713408
      %v2636 = vunpack.c.0.s8 %v2635
      %v2637 = vlaneseq
      %v2638 = vshrl.u32 %v2637, 7
      %v2639 = vsub.s32 %v2636, %v2638
      %v2640 = vrot.slane %v2626, %v2639
      %v2641 = vcombine.low %v2576, %v2592
      %v2642 = vcombine.high %v2576, %v2592
      %v2644 = vunpack.c.l.s4 1934713408
      %v2645 = vunpack.c.0.s8 %v2644
      %v2646 = vlaneseq
      %v2647 = vshrl.u32 %v2646, 7
      %v2648 = vsub.s32 %v2645, %v2647
      %v2649 = vrot.slane %v2641, %v2648
      %v2651 = vunpack.c.l.s4 1934713408
      %v2652 = vunpack.c.0.s8 %v2651
      %v2653 = vlaneseq
      %v2654 = vshrl.u32 %v2653, 7
      %v2655 = vsub.s32 %v2652, %v2654
      %v2656 = vrot.slane %v2642, %v2655
      %v2657 = vcombine.low %v2601, %v2617
      %v2658 = vcombine.high %v2601, %v2617
      %v2660 = vunpack.c.l.s4 1934713408
      %v2661 = vunpack.c.0.s8 %v2660
      %v2662 = vlaneseq
      %v2663 = vshrl.u32 %v2662, 7
      %v2664 = vsub.s32 %v2661, %v2663
      %v2665 = vrot.slane %v2657, %v2664
      %v2667 = vunpack.c.l.s4 1934713408
      %v2668 = vunpack.c.0.s8 %v2667
      %v2669 = vlaneseq
      %v2670 = vshrl.u32 %v2669, 7
      %v2671 = vsub.s32 %v2668, %v2670
      %v2672 = vrot.slane %v2658, %v2671
      %v2673 = vcombine.low %v2608, %v2624
      %v2674 = vcombine.high %v2608, %v2624
      %v2676 = vunpack.c.l.s4 1934713408
      %v2677 = vunpack.c.0.s8 %v2676
      %v2678 = vlaneseq
      %v2679 = vshrl.u32 %v2678, 7
      %v2680 = vsub.s32 %v2677, %v2679
      %v2681 = vrot.slane %v2673, %v2680
      %v2683 = vunpack.c.l.s4 1934713408
      %v2684 = vunpack.c.0.s8 %v2683
      %v2685 = vlaneseq
      %v2686 = vshrl.u32 %v2685, 7
      %v2687 = vsub.s32 %v2684, %v2686
      %v2688 = vrot.slane %v2674, %v2687
      %v2689 = vcombine.low %v2633, %v2665
      %v2690 = vcombine.high %v2633, %v2665
      %v2691 = vcombine.low %v2640, %v2672
      %v2692 = vcombine.high %v2640, %v2672
      %v2693 = vcombine.low %v2649, %v2681
      %v2694 = vcombine.high %v2649, %v2681
      %v2695 = vcombine.low %v2656, %v2688
      %v2696 = vcombine.high %v2656, %v2688
      %v2697 = vcombine.low %v847, %v869
      %v2698 = vcombine.high %v847, %v869
      %v2700 = vunpack.c.l.s4 1983009808
      %v2701 = vunpack.c.0.s8 %v2700
      %v2702 = vlaneseq
      %v2703 = vshrl.u32 %v2702, 7
      %v2704 = vsub.s32 %v2701, %v2703
      %v2705 = vrot.slane %v2697, %v2704
      %v2707 = vunpack.c.l.s4 1983009808
      %v2708 = vunpack.c.0.s8 %v2707
      %v2709 = vlaneseq
      %v2710 = vshrl.u32 %v2709, 7
      %v2711 = vsub.s32 %v2708, %v2710
      %v2712 = vrot.slane %v2698, %v2711
      %v2713 = vcombine.low %v858, %v880
      %v2714 = vcombine.high %v858, %v880
      %v2716 = vunpack.c.l.s4 1983009808
      %v2717 = vunpack.c.0.s8 %v2716
      %v2718 = vlaneseq
      %v2719 = vshrl.u32 %v2718, 7
      %v2720 = vsub.s32 %v2717, %v2719
      %v2721 = vrot.slane %v2713, %v2720
      %v2723 = vunpack.c.l.s4 1983009808
      %v2724 = vunpack.c.0.s8 %v2723
      %v2725 = vlaneseq
      %v2726 = vshrl.u32 %v2725, 7
      %v2727 = vsub.s32 %v2724, %v2726
      %v2728 = vrot.slane %v2714, %v2727
      %v2729 = vcombine.low %v891, %v913
      %v2730 = vcombine.high %v891, %v913
      %v2732 = vunpack.c.l.s4 1983009808
      %v2733 = vunpack.c.0.s8 %v2732
      %v2734 = vlaneseq
      %v2735 = vshrl.u32 %v2734, 7
      %v2736 = vsub.s32 %v2733, %v2735
      %v2737 = vrot.slane %v2729, %v2736
      %v2739 = vunpack.c.l.s4 1983009808
      %v2740 = vunpack.c.0.s8 %v2739
      %v2741 = vlaneseq
      %v2742 = vshrl.u32 %v2741, 7
      %v2743 = vsub.s32 %v2740, %v2742
      %v2744 = vrot.slane %v2730, %v2743
      %v2745 = vcombine.low %v902, %v924
      %v2746 = vcombine.high %v902, %v924
      %v2748 = vunpack.c.l.s4 1983009808
      %v2749 = vunpack.c.0.s8 %v2748
      %v2750 = vlaneseq
      %v2751 = vshrl.u32 %v2750, 7
      %v2752 = vsub.s32 %v2749, %v2751
      %v2753 = vrot.slane %v2745, %v2752
      %v2755 = vunpack.c.l.s4 1983009808
      %v2756 = vunpack.c.0.s8 %v2755
      %v2757 = vlaneseq
      %v2758 = vshrl.u32 %v2757, 7
      %v2759 = vsub.s32 %v2756, %v2758
      %v2760 = vrot.slane %v2746, %v2759
      %v2761 = vcombine.low %v2705, %v2721
      %v2762 = vcombine.high %v2705, %v2721
      %v2764 = vunpack.c.l.s4 1934713408
      %v2765 = vunpack.c.0.s8 %v2764
      %v2766 = vlaneseq
      %v2767 = vshrl.u32 %v2766, 7
      %v2768 = vsub.s32 %v2765, %v2767
      %v2769 = vrot.slane %v2761, %v2768
      %v2771 = vunpack.c.l.s4 1934713408
      %v2772 = vunpack.c.0.s8 %v2771
      %v2773 = vlaneseq
      %v2774 = vshrl.u32 %v2773, 7
      %v2775 = vsub.s32 %v2772, %v2774
      %v2776 = vrot.slane %v2762, %v2775
      %v2777 = vcombine.low %v2712, %v2728
      %v2778 = vcombine.high %v2712, %v2728
      %v2780 = vunpack.c.l.s4 1934713408
      %v2781 = vunpack.c.0.s8 %v2780
      %v2782 = vlaneseq
      %v2783 = vshrl.u32 %v2782, 7
      %v2784 = vsub.s32 %v2781, %v2783
      %v2785 = vrot.slane %v2777, %v2784
      %v2787 = vunpack.c.l.s4 1934713408
      %v2788 = vunpack.c.0.s8 %v2787
      %v2789 = vlaneseq
      %v2790 = vshrl.u32 %v2789, 7
      %v2791 = vsub.s32 %v2788, %v2790
      %v2792 = vrot.slane %v2778, %v2791
      %v2793 = vcombine.low %v2737, %v2753
      %v2794 = vcombine.high %v2737, %v2753
      %v2796 = vunpack.c.l.s4 1934713408
      %v2797 = vunpack.c.0.s8 %v2796
      %v2798 = vlaneseq
      %v2799 = vshrl.u32 %v2798, 7
      %v2800 = vsub.s32 %v2797, %v2799
      %v2801 = vrot.slane %v2793, %v2800
      %v2803 = vunpack.c.l.s4 1934713408
      %v2804 = vunpack.c.0.s8 %v2803
      %v2805 = vlaneseq
      %v2806 = vshrl.u32 %v2805, 7
      %v2807 = vsub.s32 %v2804, %v2806
      %v2808 = vrot.slane %v2794, %v2807
      %v2809 = vcombine.low %v2744, %v2760
      %v2810 = vcombine.high %v2744, %v2760
      %v2812 = vunpack.c.l.s4 1934713408
      %v2813 = vunpack.c.0.s8 %v2812
      %v2814 = vlaneseq
      %v2815 = vshrl.u32 %v2814, 7
      %v2816 = vsub.s32 %v2813, %v2815
      %v2817 = vrot.slane %v2809, %v2816
      %v2819 = vunpack.c.l.s4 1934713408
      %v2820 = vunpack.c.0.s8 %v2819
      %v2821 = vlaneseq
      %v2822 = vshrl.u32 %v2821, 7
      %v2823 = vsub.s32 %v2820, %v2822
      %v2824 = vrot.slane %v2810, %v2823
      %v2825 = vcombine.low %v2769, %v2801
      %v2826 = vcombine.high %v2769, %v2801
      %v2827 = vcombine.low %v2776, %v2808
      %v2828 = vcombine.high %v2776, %v2808
      %v2829 = vcombine.low %v2785, %v2817
      %v2830 = vcombine.high %v2785, %v2817
      %v2831 = vcombine.low %v2792, %v2824
      %v2832 = vcombine.high %v2792, %v2824
      %v2833 = vcombine.low %v763, %v785
      %v2834 = vcombine.high %v763, %v785
      %v2836 = vunpack.c.l.s4 1983009808
      %v2837 = vunpack.c.0.s8 %v2836
      %v2838 = vlaneseq
      %v2839 = vshrl.u32 %v2838, 7
      %v2840 = vsub.s32 %v2837, %v2839
      %v2841 = vrot.slane %v2833, %v2840
      %v2843 = vunpack.c.l.s4 1983009808
      %v2844 = vunpack.c.0.s8 %v2843
      %v2845 = vlaneseq
      %v2846 = vshrl.u32 %v2845, 7
      %v2847 = vsub.s32 %v2844, %v2846
      %v2848 = vrot.slane %v2834, %v2847
      %v2849 = vcombine.low %v774, %v796
      %v2850 = vcombine.high %v774, %v796
      %v2852 = vunpack.c.l.s4 1983009808
      %v2853 = vunpack.c.0.s8 %v2852
      %v2854 = vlaneseq
      %v2855 = vshrl.u32 %v2854, 7
      %v2856 = vsub.s32 %v2853, %v2855
      %v2857 = vrot.slane %v2849, %v2856
      %v2859 = vunpack.c.l.s4 1983009808
      %v2860 = vunpack.c.0.s8 %v2859
      %v2861 = vlaneseq
      %v2862 = vshrl.u32 %v2861, 7
      %v2863 = vsub.s32 %v2860, %v2862
      %v2864 = vrot.slane %v2850, %v2863
      %v2865 = vcombine.low %v807, %v829
      %v2866 = vcombine.high %v807, %v829
      %v2868 = vunpack.c.l.s4 1983009808
      %v2869 = vunpack.c.0.s8 %v2868
      %v2870 = vlaneseq
      %v2871 = vshrl.u32 %v2870, 7
      %v2872 = vsub.s32 %v2869, %v2871
      %v2873 = vrot.slane %v2865, %v2872
      %v2875 = vunpack.c.l.s4 1983009808
      %v2876 = vunpack.c.0.s8 %v2875
      %v2877 = vlaneseq
      %v2878 = vshrl.u32 %v2877, 7
      %v2879 = vsub.s32 %v2876, %v2878
      %v2880 = vrot.slane %v2866, %v2879
      %v2881 = vcombine.low %v818, %v840
      %v2882 = vcombine.high %v818, %v840
      %v2884 = vunpack.c.l.s4 1983009808
      %v2885 = vunpack.c.0.s8 %v2884
      %v2886 = vlaneseq
      %v2887 = vshrl.u32 %v2886, 7
      %v2888 = vsub.s32 %v2885, %v2887
      %v2889 = vrot.slane %v2881, %v2888
      %v2891 = vunpack.c.l.s4 1983009808
      %v2892 = vunpack.c.0.s8 %v2891
      %v2893 = vlaneseq
      %v2894 = vshrl.u32 %v2893, 7
      %v2895 = vsub.s32 %v2892, %v2894
      %v2896 = vrot.slane %v2882, %v2895
      %v2897 = vcombine.low %v2841, %v2857
      %v2898 = vcombine.high %v2841, %v2857
      %v2900 = vunpack.c.l.s4 1934713408
      %v2901 = vunpack.c.0.s8 %v2900
      %v2902 = vlaneseq
      %v2903 = vshrl.u32 %v2902, 7
      %v2904 = vsub.s32 %v2901, %v2903
      %v2905 = vrot.slane %v2897, %v2904
      %v2907 = vunpack.c.l.s4 1934713408
      %v2908 = vunpack.c.0.s8 %v2907
      %v2909 = vlaneseq
      %v2910 = vshrl.u32 %v2909, 7
      %v2911 = vsub.s32 %v2908, %v2910
      %v2912 = vrot.slane %v2898, %v2911
      %v2913 = vcombine.low %v2848, %v2864
      %v2914 = vcombine.high %v2848, %v2864
      %v2916 = vunpack.c.l.s4 1934713408
      %v2917 = vunpack.c.0.s8 %v2916
      %v2918 = vlaneseq
      %v2919 = vshrl.u32 %v2918, 7
      %v2920 = vsub.s32 %v2917, %v2919
      %v2921 = vrot.slane %v2913, %v2920
      %v2923 = vunpack.c.l.s4 1934713408
      %v2924 = vunpack.c.0.s8 %v2923
      %v2925 = vlaneseq
      %v2926 = vshrl.u32 %v2925, 7
      %v2927 = vsub.s32 %v2924, %v2926
      %v2928 = vrot.slane %v2914, %v2927
      %v2929 = vcombine.low %v2873, %v2889
      %v2930 = vcombine.high %v2873, %v2889
      %v2932 = vunpack.c.l.s4 1934713408
      %v2933 = vunpack.c.0.s8 %v2932
      %v2934 = vlaneseq
      %v2935 = vshrl.u32 %v2934, 7
      %v2936 = vsub.s32 %v2933, %v2935
      %v2937 = vrot.slane %v2929, %v2936
      %v2939 = vunpack.c.l.s4 1934713408
      %v2940 = vunpack.c.0.s8 %v2939
      %v2941 = vlaneseq
      %v2942 = vshrl.u32 %v2941, 7
      %v2943 = vsub.s32 %v2940, %v2942
      %v2944 = vrot.slane %v2930, %v2943
      %v2945 = vcombine.low %v2880, %v2896
      %v2946 = vcombine.high %v2880, %v2896
      %v2948 = vunpack.c.l.s4 1934713408
      %v2949 = vunpack.c.0.s8 %v2948
      %v2950 = vlaneseq
      %v2951 = vshrl.u32 %v2950, 7
      %v2952 = vsub.s32 %v2949, %v2951
      %v2953 = vrot.slane %v2945, %v2952
      %v2955 = vunpack.c.l.s4 1934713408
      %v2956 = vunpack.c.0.s8 %v2955
      %v2957 = vlaneseq
      %v2958 = vshrl.u32 %v2957, 7
      %v2959 = vsub.s32 %v2956, %v2958
      %v2960 = vrot.slane %v2946, %v2959
      %v2961 = vcombine.low %v2905, %v2937
      %v2962 = vcombine.high %v2905, %v2937
      %v2963 = vcombine.low %v2912, %v2944
      %v2964 = vcombine.high %v2912, %v2944
      %v2965 = vcombine.low %v2921, %v2953
      %v2966 = vcombine.high %v2921, %v2953
      %v2967 = vcombine.low %v2928, %v2960
      %v2968 = vcombine.high %v2928, %v2960
      %v2969 = vcombine.low %v851, %v873
      %v2970 = vcombine.high %v851, %v873
      %v2972 = vunpack.c.l.s4 1983009808
      %v2973 = vunpack.c.0.s8 %v2972
      %v2974 = vlaneseq
      %v2975 = vshrl.u32 %v2974, 7
      %v2976 = vsub.s32 %v2973, %v2975
      %v2977 = vrot.slane %v2969, %v2976
      %v2979 = vunpack.c.l.s4 1983009808
      %v2980 = vunpack.c.0.s8 %v2979
      %v2981 = vlaneseq
      %v2982 = vshrl.u32 %v2981, 7
      %v2983 = vsub.s32 %v2980, %v2982
      %v2984 = vrot.slane %v2970, %v2983
      %v2985 = vcombine.low %v862, %v884
      %v2986 = vcombine.high %v862, %v884
      %v2988 = vunpack.c.l.s4 1983009808
      %v2989 = vunpack.c.0.s8 %v2988
      %v2990 = vlaneseq
      %v2991 = vshrl.u32 %v2990, 7
      %v2992 = vsub.s32 %v2989, %v2991
      %v2993 = vrot.slane %v2985, %v2992
      %v2995 = vunpack.c.l.s4 1983009808
      %v2996 = vunpack.c.0.s8 %v2995
      %v2997 = vlaneseq
      %v2998 = vshrl.u32 %v2997, 7
      %v2999 = vsub.s32 %v2996, %v2998
      %v3000 = vrot.slane %v2986, %v2999
      %v3001 = vcombine.low %v895, %v917
      %v3002 = vcombine.high %v895, %v917
      %v3004 = vunpack.c.l.s4 1983009808
      %v3005 = vunpack.c.0.s8 %v3004
      %v3006 = vlaneseq
      %v3007 = vshrl.u32 %v3006, 7
      %v3008 = vsub.s32 %v3005, %v3007
      %v3009 = vrot.slane %v3001, %v3008
      %v3011 = vunpack.c.l.s4 1983009808
      %v3012 = vunpack.c.0.s8 %v3011
      %v3013 = vlaneseq
      %v3014 = vshrl.u32 %v3013, 7
      %v3015 = vsub.s32 %v3012, %v3014
      %v3016 = vrot.slane %v3002, %v3015
      %v3017 = vcombine.low %v906, %v928
      %v3018 = vcombine.high %v906, %v928
      %v3020 = vunpack.c.l.s4 1983009808
      %v3021 = vunpack.c.0.s8 %v3020
      %v3022 = vlaneseq
      %v3023 = vshrl.u32 %v3022, 7
      %v3024 = vsub.s32 %v3021, %v3023
      %v3025 = vrot.slane %v3017, %v3024
      %v3027 = vunpack.c.l.s4 1983009808
      %v3028 = vunpack.c.0.s8 %v3027
      %v3029 = vlaneseq
      %v3030 = vshrl.u32 %v3029, 7
      %v3031 = vsub.s32 %v3028, %v3030
      %v3032 = vrot.slane %v3018, %v3031
      %v3033 = vcombine.low %v2977, %v2993
      %v3034 = vcombine.high %v2977, %v2993
      %v3036 = vunpack.c.l.s4 1934713408
      %v3037 = vunpack.c.0.s8 %v3036
      %v3038 = vlaneseq
      %v3039 = vshrl.u32 %v3038, 7
      %v3040 = vsub.s32 %v3037, %v3039
      %v3041 = vrot.slane %v3033, %v3040
      %v3043 = vunpack.c.l.s4 1934713408
      %v3044 = vunpack.c.0.s8 %v3043
      %v3045 = vlaneseq
      %v3046 = vshrl.u32 %v3045, 7
      %v3047 = vsub.s32 %v3044, %v3046
      %v3048 = vrot.slane %v3034, %v3047
      %v3049 = vcombine.low %v2984, %v3000
      %v3050 = vcombine.high %v2984, %v3000
      %v3052 = vunpack.c.l.s4 1934713408
      %v3053 = vunpack.c.0.s8 %v3052
      %v3054 = vlaneseq
      %v3055 = vshrl.u32 %v3054, 7
      %v3056 = vsub.s32 %v3053, %v3055
      %v3057 = vrot.slane %v3049, %v3056
      %v3059 = vunpack.c.l.s4 1934713408
      %v3060 = vunpack.c.0.s8 %v3059
      %v3061 = vlaneseq
      %v3062 = vshrl.u32 %v3061, 7
      %v3063 = vsub.s32 %v3060, %v3062
      %v3064 = vrot.slane %v3050, %v3063
      %v3065 = vcombine.low %v3009, %v3025
      %v3066 = vcombine.high %v3009, %v3025
      %v3068 = vunpack.c.l.s4 1934713408
      %v3069 = vunpack.c.0.s8 %v3068
      %v3070 = vlaneseq
      %v3071 = vshrl.u32 %v3070, 7
      %v3072 = vsub.s32 %v3069, %v3071
      %v3073 = vrot.slane %v3065, %v3072
      %v3075 = vunpack.c.l.s4 1934713408
      %v3076 = vunpack.c.0.s8 %v3075
      %v3077 = vlaneseq
      %v3078 = vshrl.u32 %v3077, 7
      %v3079 = vsub.s32 %v3076, %v3078
      %v3080 = vrot.slane %v3066, %v3079
      %v3081 = vcombine.low %v3016, %v3032
      %v3082 = vcombine.high %v3016, %v3032
      %v3084 = vunpack.c.l.s4 1934713408
      %v3085 = vunpack.c.0.s8 %v3084
      %v3086 = vlaneseq
      %v3087 = vshrl.u32 %v3086, 7
      %v3088 = vsub.s32 %v3085, %v3087
      %v3089 = vrot.slane %v3081, %v3088
      %v3091 = vunpack.c.l.s4 1934713408
      %v3092 = vunpack.c.0.s8 %v3091
      %v3093 = vlaneseq
      %v3094 = vshrl.u32 %v3093, 7
      %v3095 = vsub.s32 %v3092, %v3094
      %v3096 = vrot.slane %v3082, %v3095
      %v3097 = vcombine.low %v3041, %v3073
      %v3098 = vcombine.high %v3041, %v3073
      %v3099 = vcombine.low %v3048, %v3080
      %v3100 = vcombine.high %v3048, %v3080
      %v3101 = vcombine.low %v3057, %v3089
      %v3102 = vcombine.high %v3057, %v3089
      %v3103 = vcombine.low %v3064, %v3096
      %v3104 = vcombine.high %v3064, %v3096
      %3113 = vrot.lane.b32.xlu0 %v1058, 2
      %v3114 = vpop.permute.xlu0 %3113
      %3115 = vrot.lane.b32.xlu0 %v1194, 2
      %v3116 = vpop.permute.xlu0 %3115
      %3117 = vrot.lane.b32.xlu0 %v1602, 2
      %v3118 = vpop.permute.xlu0 %3117
      %3119 = vrot.lane.b32.xlu0 %v1738, 2
      %v3120 = vpop.permute.xlu0 %3119
      %3121 = vrot.lane.b32.xlu0 %v2146, 2
      %v3122 = vpop.permute.xlu0 %3121
      %3123 = vrot.lane.b32.xlu0 %v2282, 2
      %v3124 = vpop.permute.xlu0 %3123
      %3125 = vrot.lane.b32.xlu0 %v2690, 2
      %v3126 = vpop.permute.xlu0 %3125
      %3127 = vrot.lane.b32.xlu0 %v2826, 2
      %v3128 = vpop.permute.xlu0 %3127
      %3145 = vrot.lane.b32.xlu0 %v1059, 4
      %v3146 = vpop.permute.xlu0 %3145
      %3147 = vrot.lane.b32.xlu0 %v1195, 4
      %v3148 = vpop.permute.xlu0 %3147
      %3149 = vrot.lane.b32.xlu0 %v1603, 4
      %v3150 = vpop.permute.xlu0 %3149
      %3151 = vrot.lane.b32.xlu0 %v1739, 4
      %v3152 = vpop.permute.xlu0 %3151
      %3153 = vrot.lane.b32.xlu0 %v2147, 4
      %v3154 = vpop.permute.xlu0 %3153
      %3155 = vrot.lane.b32.xlu0 %v2283, 4
      %v3156 = vpop.permute.xlu0 %3155
      %3157 = vrot.lane.b32.xlu0 %v2691, 4
      %v3158 = vpop.permute.xlu0 %3157
      %3159 = vrot.lane.b32.xlu0 %v2827, 4
      %v3160 = vpop.permute.xlu0 %3159
      %3177 = vrot.lane.b32.xlu0 %v1060, 6
      %v3178 = vpop.permute.xlu0 %3177
      %3179 = vrot.lane.b32.xlu0 %v1196, 6
      %v3180 = vpop.permute.xlu0 %3179
      %3181 = vrot.lane.b32.xlu0 %v1604, 6
      %v3182 = vpop.permute.xlu0 %3181
      %3183 = vrot.lane.b32.xlu0 %v1740, 6
      %v3184 = vpop.permute.xlu0 %3183
      %3185 = vrot.lane.b32.xlu0 %v2148, 6
      %v3186 = vpop.permute.xlu0 %3185
      %3187 = vrot.lane.b32.xlu0 %v2284, 6
      %v3188 = vpop.permute.xlu0 %3187
      %3189 = vrot.lane.b32.xlu0 %v2692, 6
      %v3190 = vpop.permute.xlu0 %3189
      %3191 = vrot.lane.b32.xlu0 %v2828, 6
      %v3192 = vpop.permute.xlu0 %3191
      %3209 = vrot.lane.b32.xlu0 %v1061, 8
      %v3210 = vpop.permute.xlu0 %3209
      %3211 = vrot.lane.b32.xlu0 %v1197, 8
      %v3212 = vpop.permute.xlu0 %3211
      %3213 = vrot.lane.b32.xlu0 %v1605, 8
      %v3214 = vpop.permute.xlu0 %3213
      %3215 = vrot.lane.b32.xlu0 %v1741, 8
      %v3216 = vpop.permute.xlu0 %3215
      %3217 = vrot.lane.b32.xlu0 %v2149, 8
      %v3218 = vpop.permute.xlu0 %3217
      %3219 = vrot.lane.b32.xlu0 %v2285, 8
      %v3220 = vpop.permute.xlu0 %3219
      %3221 = vrot.lane.b32.xlu0 %v2693, 8
      %v3222 = vpop.permute.xlu0 %3221
      %3223 = vrot.lane.b32.xlu0 %v2829, 8
      %v3224 = vpop.permute.xlu0 %3223
      %3241 = vrot.lane.b32.xlu0 %v1062, 10
      %v3242 = vpop.permute.xlu0 %3241
      %3243 = vrot.lane.b32.xlu0 %v1198, 10
      %v3244 = vpop.permute.xlu0 %3243
      %3245 = vrot.lane.b32.xlu0 %v1606, 10
      %v3246 = vpop.permute.xlu0 %3245
      %3247 = vrot.lane.b32.xlu0 %v1742, 10
      %v3248 = vpop.permute.xlu0 %3247
      %3249 = vrot.lane.b32.xlu0 %v2150, 10
      %v3250 = vpop.permute.xlu0 %3249
      %3251 = vrot.lane.b32.xlu0 %v2286, 10
      %v3252 = vpop.permute.xlu0 %3251
      %3253 = vrot.lane.b32.xlu0 %v2694, 10
      %v3254 = vpop.permute.xlu0 %3253
      %3255 = vrot.lane.b32.xlu0 %v2830, 10
      %v3256 = vpop.permute.xlu0 %3255
      %3273 = vrot.lane.b32.xlu0 %v1063, 12
      %v3274 = vpop.permute.xlu0 %3273
      %3275 = vrot.lane.b32.xlu0 %v1199, 12
      %v3276 = vpop.permute.xlu0 %3275
      %3277 = vrot.lane.b32.xlu0 %v1607, 12
      %v3278 = vpop.permute.xlu0 %3277
      %3279 = vrot.lane.b32.xlu0 %v1743, 12
      %v3280 = vpop.permute.xlu0 %3279
      %3281 = vrot.lane.b32.xlu0 %v2151, 12
      %v3282 = vpop.permute.xlu0 %3281
      %3283 = vrot.lane.b32.xlu0 %v2287, 12
      %v3284 = vpop.permute.xlu0 %3283
      %3285 = vrot.lane.b32.xlu0 %v2695, 12
      %v3286 = vpop.permute.xlu0 %3285
      %3287 = vrot.lane.b32.xlu0 %v2831, 12
      %v3288 = vpop.permute.xlu0 %3287
      %3305 = vrot.lane.b32.xlu0 %v1064, 14
      %v3306 = vpop.permute.xlu0 %3305
      %3307 = vrot.lane.b32.xlu0 %v1200, 14
      %v3308 = vpop.permute.xlu0 %3307
      %3309 = vrot.lane.b32.xlu0 %v1608, 14
      %v3310 = vpop.permute.xlu0 %3309
      %3311 = vrot.lane.b32.xlu0 %v1744, 14
      %v3312 = vpop.permute.xlu0 %3311
      %3313 = vrot.lane.b32.xlu0 %v2152, 14
      %v3314 = vpop.permute.xlu0 %3313
      %3315 = vrot.lane.b32.xlu0 %v2288, 14
      %v3316 = vpop.permute.xlu0 %3315
      %3317 = vrot.lane.b32.xlu0 %v2696, 14
      %v3318 = vpop.permute.xlu0 %3317
      %3319 = vrot.lane.b32.xlu0 %v2832, 14
      %v3320 = vpop.permute.xlu0 %3319
      %3337 = vrot.lane.b32.xlu0 %v1329, 16
      %v3338 = vpop.permute.xlu0 %3337
      %3339 = vrot.lane.b32.xlu0 %v1465, 16
      %v3340 = vpop.permute.xlu0 %3339
      %3341 = vrot.lane.b32.xlu0 %v1873, 16
      %v3342 = vpop.permute.xlu0 %3341
      %3343 = vrot.lane.b32.xlu0 %v2009, 16
      %v3344 = vpop.permute.xlu0 %3343
      %3345 = vrot.lane.b32.xlu0 %v2417, 16
      %v3346 = vpop.permute.xlu0 %3345
      %3347 = vrot.lane.b32.xlu0 %v2553, 16
      %v3348 = vpop.permute.xlu0 %3347
      %3349 = vrot.lane.b32.xlu0 %v2961, 16
      %v3350 = vpop.permute.xlu0 %3349
      %3351 = vrot.lane.b32.xlu0 %v3097, 16
      %v3352 = vpop.permute.xlu0 %3351
      %3369 = vrot.lane.b32.xlu0 %v1330, 18
      %v3370 = vpop.permute.xlu0 %3369
      %3371 = vrot.lane.b32.xlu0 %v1466, 18
      %v3372 = vpop.permute.xlu0 %3371
      %3373 = vrot.lane.b32.xlu0 %v1874, 18
      %v3374 = vpop.permute.xlu0 %3373
      %3375 = vrot.lane.b32.xlu0 %v2010, 18
      %v3376 = vpop.permute.xlu0 %3375
      %3377 = vrot.lane.b32.xlu0 %v2418, 18
      %v3378 = vpop.permute.xlu0 %3377
      %3379 = vrot.lane.b32.xlu0 %v2554, 18
      %v3380 = vpop.permute.xlu0 %3379
      %3381 = vrot.lane.b32.xlu0 %v2962, 18
      %v3382 = vpop.permute.xlu0 %3381
      %3383 = vrot.lane.b32.xlu0 %v3098, 18
      %v3384 = vpop.permute.xlu0 %3383
      %3401 = vrot.lane.b32.xlu0 %v1331, 20
      %v3402 = vpop.permute.xlu0 %3401
      %3403 = vrot.lane.b32.xlu0 %v1467, 20
      %v3404 = vpop.permute.xlu0 %3403
      %3405 = vrot.lane.b32.xlu0 %v1875, 20
      %v3406 = vpop.permute.xlu0 %3405
      %3407 = vrot.lane.b32.xlu0 %v2011, 20
      %v3408 = vpop.permute.xlu0 %3407
      %3409 = vrot.lane.b32.xlu0 %v2419, 20
      %v3410 = vpop.permute.xlu0 %3409
      %3411 = vrot.lane.b32.xlu0 %v2555, 20
      %v3412 = vpop.permute.xlu0 %3411
      %3413 = vrot.lane.b32.xlu0 %v2963, 20
      %v3414 = vpop.permute.xlu0 %3413
      %3415 = vrot.lane.b32.xlu0 %v3099, 20
      %v3416 = vpop.permute.xlu0 %3415
      %3433 = vrot.lane.b32.xlu0 %v1332, 22
      %v3434 = vpop.permute.xlu0 %3433
      %3435 = vrot.lane.b32.xlu0 %v1468, 22
      %v3436 = vpop.permute.xlu0 %3435
      %3437 = vrot.lane.b32.xlu0 %v1876, 22
      %v3438 = vpop.permute.xlu0 %3437
      %3439 = vrot.lane.b32.xlu0 %v2012, 22
      %v3440 = vpop.permute.xlu0 %3439
      %3441 = vrot.lane.b32.xlu0 %v2420, 22
      %v3442 = vpop.permute.xlu0 %3441
      %3443 = vrot.lane.b32.xlu0 %v2556, 22
      %v3444 = vpop.permute.xlu0 %3443
      %3445 = vrot.lane.b32.xlu0 %v2964, 22
      %v3446 = vpop.permute.xlu0 %3445
      %3447 = vrot.lane.b32.xlu0 %v3100, 22
      %v3448 = vpop.permute.xlu0 %3447
      %3465 = vrot.lane.b32.xlu0 %v1333, 24
      %v3466 = vpop.permute.xlu0 %3465
      %3467 = vrot.lane.b32.xlu0 %v1469, 24
      %v3468 = vpop.permute.xlu0 %3467
      %3469 = vrot.lane.b32.xlu0 %v1877, 24
      %v3470 = vpop.permute.xlu0 %3469
      %3471 = vrot.lane.b32.xlu0 %v2013, 24
      %v3472 = vpop.permute.xlu0 %3471
      %3473 = vrot.lane.b32.xlu0 %v2421, 24
      %v3474 = vpop.permute.xlu0 %3473
      %3475 = vrot.lane.b32.xlu0 %v2557, 24
      %v3476 = vpop.permute.xlu0 %3475
      %3477 = vrot.lane.b32.xlu0 %v2965, 24
      %v3478 = vpop.permute.xlu0 %3477
      %3479 = vrot.lane.b32.xlu0 %v3101, 24
      %v3480 = vpop.permute.xlu0 %3479
      %3497 = vrot.lane.b32.xlu0 %v1334, 26
      %v3498 = vpop.permute.xlu0 %3497
      %3499 = vrot.lane.b32.xlu0 %v1470, 26
      %v3500 = vpop.permute.xlu0 %3499
      %3501 = vrot.lane.b32.xlu0 %v1878, 26
      %v3502 = vpop.permute.xlu0 %3501
      %3503 = vrot.lane.b32.xlu0 %v2014, 26
      %v3504 = vpop.permute.xlu0 %3503
      %3505 = vrot.lane.b32.xlu0 %v2422, 26
      %v3506 = vpop.permute.xlu0 %3505
      %3507 = vrot.lane.b32.xlu0 %v2558, 26
      %v3508 = vpop.permute.xlu0 %3507
      %3509 = vrot.lane.b32.xlu0 %v2966, 26
      %v3510 = vpop.permute.xlu0 %3509
      %3511 = vrot.lane.b32.xlu0 %v3102, 26
      %v3512 = vpop.permute.xlu0 %3511
      %3529 = vrot.lane.b32.xlu0 %v1335, 28
      %v3530 = vpop.permute.xlu0 %3529
      %3531 = vrot.lane.b32.xlu0 %v1471, 28
      %v3532 = vpop.permute.xlu0 %3531
      %3533 = vrot.lane.b32.xlu0 %v1879, 28
      %v3534 = vpop.permute.xlu0 %3533
      %3535 = vrot.lane.b32.xlu0 %v2015, 28
      %v3536 = vpop.permute.xlu0 %3535
      %3537 = vrot.lane.b32.xlu0 %v2423, 28
      %v3538 = vpop.permute.xlu0 %3537
      %3539 = vrot.lane.b32.xlu0 %v2559, 28
      %v3540 = vpop.permute.xlu0 %3539
      %3541 = vrot.lane.b32.xlu0 %v2967, 28
      %v3542 = vpop.permute.xlu0 %3541
      %3543 = vrot.lane.b32.xlu0 %v3103, 28
      %v3544 = vpop.permute.xlu0 %3543
      %3561 = vrot.lane.b32.xlu0 %v1336, 30
      %v3562 = vpop.permute.xlu0 %3561
      %3563 = vrot.lane.b32.xlu0 %v1472, 30
      %v3564 = vpop.permute.xlu0 %3563
      %3565 = vrot.lane.b32.xlu0 %v1880, 30
      %v3566 = vpop.permute.xlu0 %3565
      %3567 = vrot.lane.b32.xlu0 %v2016, 30
      %v3568 = vpop.permute.xlu0 %3567
      %3569 = vrot.lane.b32.xlu0 %v2424, 30
      %v3570 = vpop.permute.xlu0 %3569
      %3571 = vrot.lane.b32.xlu0 %v2560, 30
      %v3572 = vpop.permute.xlu0 %3571
      %3573 = vrot.lane.b32.xlu0 %v2968, 30
      %v3574 = vpop.permute.xlu0 %3573
      %3575 = vrot.lane.b32.xlu0 %v3104, 30
      %v3576 = vpop.permute.xlu0 %3575
      %vm3585 = vcmask 15360
      %v3586 = vsel %vm3585, %v1057, %v3114
      %v3587 = vsel %vm3585, %v1193, %v3116
      %v3588 = vsel %vm3585, %v1601, %v3118
      %v3589 = vsel %vm3585, %v1737, %v3120
      %v3590 = vsel %vm3585, %v2145, %v3122
      %v3591 = vsel %vm3585, %v2281, %v3124
      %v3592 = vsel %vm3585, %v2689, %v3126
      %v3593 = vsel %vm3585, %v2825, %v3128
      %vm3594 = vcmask 31744
      %v3595 = vsel %vm3594, %v3586, %v3146
      %v3596 = vsel %vm3594, %v3587, %v3148
      %v3597 = vsel %vm3594, %v3588, %v3150
      %v3598 = vsel %vm3594, %v3589, %v3152
      %v3599 = vsel %vm3594, %v3590, %v3154
      %v3600 = vsel %vm3594, %v3591, %v3156
      %v3601 = vsel %vm3594, %v3592, %v3158
      %v3602 = vsel %vm3594, %v3593, %v3160
      %vm3603 = vcmask 48128
      %v3604 = vsel %vm3603, %v3595, %v3178
      %v3605 = vsel %vm3603, %v3596, %v3180
      %v3606 = vsel %vm3603, %v3597, %v3182
      %v3607 = vsel %vm3603, %v3598, %v3184
      %v3608 = vsel %vm3603, %v3599, %v3186
      %v3609 = vsel %vm3603, %v3600, %v3188
      %v3610 = vsel %vm3603, %v3601, %v3190
      %v3611 = vsel %vm3603, %v3602, %v3192
      %vm3612 = vcmask 64512
      %v3613 = vsel %vm3612, %v3604, %v3210
      %v3614 = vsel %vm3612, %v3605, %v3212
      %v3615 = vsel %vm3612, %v3606, %v3214
      %v3616 = vsel %vm3612, %v3607, %v3216
      %v3617 = vsel %vm3612, %v3608, %v3218
      %v3618 = vsel %vm3612, %v3609, %v3220
      %v3619 = vsel %vm3612, %v3610, %v3222
      %v3620 = vsel %vm3612, %v3611, %v3224
      %vm3621 = vcmask 80896
      %v3622 = vsel %vm3621, %v3613, %v3242
      %v3623 = vsel %vm3621, %v3614, %v3244
      %v3624 = vsel %vm3621, %v3615, %v3246
      %v3625 = vsel %vm3621, %v3616, %v3248
      %v3626 = vsel %vm3621, %v3617, %v3250
      %v3627 = vsel %vm3621, %v3618, %v3252
      %v3628 = vsel %vm3621, %v3619, %v3254
      %v3629 = vsel %vm3621, %v3620, %v3256
      %vm3630 = vcmask 97280
      %v3631 = vsel %vm3630, %v3622, %v3274
      %v3632 = vsel %vm3630, %v3623, %v3276
      %v3633 = vsel %vm3630, %v3624, %v3278
      %v3634 = vsel %vm3630, %v3625, %v3280
      %v3635 = vsel %vm3630, %v3626, %v3282
      %v3636 = vsel %vm3630, %v3627, %v3284
      %v3637 = vsel %vm3630, %v3628, %v3286
      %v3638 = vsel %vm3630, %v3629, %v3288
      %vm3639 = vcmask 113664
      %v3640 = vsel %vm3639, %v3631, %v3306
      %v3641 = vsel %vm3639, %v3632, %v3308
      %v3642 = vsel %vm3639, %v3633, %v3310
      %v3643 = vsel %vm3639, %v3634, %v3312
      %v3644 = vsel %vm3639, %v3635, %v3314
      %v3645 = vsel %vm3639, %v3636, %v3316
      %v3646 = vsel %vm3639, %v3637, %v3318
      %v3647 = vsel %vm3639, %v3638, %v3320
      %vm3648 = vcmask 130048
      %v3649 = vsel %vm3648, %v3640, %v3338
      %v3650 = vsel %vm3648, %v3641, %v3340
      %v3651 = vsel %vm3648, %v3642, %v3342
      %v3652 = vsel %vm3648, %v3643, %v3344
      %v3653 = vsel %vm3648, %v3644, %v3346
      %v3654 = vsel %vm3648, %v3645, %v3348
      %v3655 = vsel %vm3648, %v3646, %v3350
      %v3656 = vsel %vm3648, %v3647, %v3352
      %vm3657 = vcmask 146432
      %v3658 = vsel %vm3657, %v3649, %v3370
      %v3659 = vsel %vm3657, %v3650, %v3372
      %v3660 = vsel %vm3657, %v3651, %v3374
      %v3661 = vsel %vm3657, %v3652, %v3376
      %v3662 = vsel %vm3657, %v3653, %v3378
      %v3663 = vsel %vm3657, %v3654, %v3380
      %v3664 = vsel %vm3657, %v3655, %v3382
      %v3665 = vsel %vm3657, %v3656, %v3384
      %vm3666 = vcmask 162816
      %v3667 = vsel %vm3666, %v3658, %v3402
      %v3668 = vsel %vm3666, %v3659, %v3404
      %v3669 = vsel %vm3666, %v3660, %v3406
      %v3670 = vsel %vm3666, %v3661, %v3408
      %v3671 = vsel %vm3666, %v3662, %v3410
      %v3672 = vsel %vm3666, %v3663, %v3412
      %v3673 = vsel %vm3666, %v3664, %v3414
      %v3674 = vsel %vm3666, %v3665, %v3416
      %vm3675 = vcmask 179200
      %v3676 = vsel %vm3675, %v3667, %v3434
      %v3677 = vsel %vm3675, %v3668, %v3436
      %v3678 = vsel %vm3675, %v3669, %v3438
      %v3679 = vsel %vm3675, %v3670, %v3440
      %v3680 = vsel %vm3675, %v3671, %v3442
      %v3681 = vsel %vm3675, %v3672, %v3444
      %v3682 = vsel %vm3675, %v3673, %v3446
      %v3683 = vsel %vm3675, %v3674, %v3448
      %vm3684 = vcmask 195584
      %v3685 = vsel %vm3684, %v3676, %v3466
      %v3686 = vsel %vm3684, %v3677, %v3468
      %v3687 = vsel %vm3684, %v3678, %v3470
      %v3688 = vsel %vm3684, %v3679, %v3472
      %v3689 = vsel %vm3684, %v3680, %v3474
      %v3690 = vsel %vm3684, %v3681, %v3476
      %v3691 = vsel %vm3684, %v3682, %v3478
      %v3692 = vsel %vm3684, %v3683, %v3480
      %vm3693 = vcmask 211968
      %v3694 = vsel %vm3693, %v3685, %v3498
      %v3695 = vsel %vm3693, %v3686, %v3500
      %v3696 = vsel %vm3693, %v3687, %v3502
      %v3697 = vsel %vm3693, %v3688, %v3504
      %v3698 = vsel %vm3693, %v3689, %v3506
      %v3699 = vsel %vm3693, %v3690, %v3508
      %v3700 = vsel %vm3693, %v3691, %v3510
      %v3701 = vsel %vm3693, %v3692, %v3512
      %vm3702 = vcmask 228352
      %v3703 = vsel %vm3702, %v3694, %v3530
      %v3704 = vsel %vm3702, %v3695, %v3532
      %v3705 = vsel %vm3702, %v3696, %v3534
      %v3706 = vsel %vm3702, %v3697, %v3536
      %v3707 = vsel %vm3702, %v3698, %v3538
      %v3708 = vsel %vm3702, %v3699, %v3540
      %v3709 = vsel %vm3702, %v3700, %v3542
      %v3710 = vsel %vm3702, %v3701, %v3544
      %vm3711 = vcmask 244736
      %v3712 = vsel %vm3711, %v3703, %v3562
      %v3713 = vsel %vm3711, %v3704, %v3564
      %v3714 = vsel %vm3711, %v3705, %v3566
      %v3715 = vsel %vm3711, %v3706, %v3568
      %v3716 = vsel %vm3711, %v3707, %v3570
      %v3717 = vsel %vm3711, %v3708, %v3572
      %v3718 = vsel %vm3711, %v3709, %v3574
      %v3719 = vsel %vm3711, %v3710, %v3576
      %v3720 = vlaneseq
      %v3721 = vshrl.u32 %v3720, 7
      %v3722 = vsub.s32 0, %v3721
      %v3723 = vrot.slane %v221, %v3722
      %v3724 = vlaneseq
      %v3725 = vshrl.u32 %v3724, 7
      %v3726 = vsub.s32 0, %v3725
      %v3727 = vrot.slane %v222, %v3726
      %v3728 = vlaneseq
      %v3729 = vshrl.u32 %v3728, 7
      %v3730 = vsub.s32 0, %v3729
      %v3731 = vrot.slane %v223, %v3730
      %v3732 = vlaneseq
      %v3733 = vshrl.u32 %v3732, 7
      %v3734 = vsub.s32 0, %v3733
      %v3735 = vrot.slane %v224, %v3734
      %v3736 = vmul.f32 %v3712, %v3723
      %v3737 = vmul.f32 %v3713, %v3723
      %v3738 = vmul.f32 %v3714, %v3727
      %v3739 = vmul.f32 %v3715, %v3727
      %v3740 = vmul.f32 %v3716, %v3731
      %v3741 = vmul.f32 %v3717, %v3731
      %v3742 = vmul.f32 %v3718, %v3735
      %v3743 = vmul.f32 %v3719, %v3735
      %v3744 = vlaneseq
      %v3745 = vshrl.u32 %v3744, 7
      %v3746 = vsub.s32 1, %v3745
      %v3747 = vrot.slane %v221, %v3746
      %v3748 = vlaneseq
      %v3749 = vshrl.u32 %v3748, 7
      %v3750 = vsub.s32 1, %v3749
      %v3751 = vrot.slane %v222, %v3750
      %v3752 = vlaneseq
      %v3753 = vshrl.u32 %v3752, 7
      %v3754 = vsub.s32 1, %v3753
      %v3755 = vrot.slane %v223, %v3754
      %v3756 = vlaneseq
      %v3757 = vshrl.u32 %v3756, 7
      %v3758 = vsub.s32 1, %v3757
      %v3759 = vrot.slane %v224, %v3758
      %v3760 = vmul.f32 %v3712, %v3747
      %v3761 = vmul.f32 %v3713, %v3747
      %v3762 = vmul.f32 %v3714, %v3751
      %v3763 = vmul.f32 %v3715, %v3751
      %v3764 = vmul.f32 %v3716, %v3755
      %v3765 = vmul.f32 %v3717, %v3755
      %v3766 = vmul.f32 %v3718, %v3759
      %v3767 = vmul.f32 %v3719, %v3759
      %3776 = vrot.lane.b32.xlu0 %v3760, 32
      %v3777 = vpop.permute.xlu0 %3776
      %3778 = vrot.lane.b32.xlu0 %v3761, 32
      %v3779 = vpop.permute.xlu0 %3778
      %3780 = vrot.lane.b32.xlu0 %v3762, 32
      %v3781 = vpop.permute.xlu0 %3780
      %3782 = vrot.lane.b32.xlu0 %v3763, 32
      %v3783 = vpop.permute.xlu0 %3782
      %3784 = vrot.lane.b32.xlu0 %v3764, 32
      %v3785 = vpop.permute.xlu0 %3784
      %3786 = vrot.lane.b32.xlu0 %v3765, 32
      %v3787 = vpop.permute.xlu0 %3786
      %3788 = vrot.lane.b32.xlu0 %v3766, 32
      %v3789 = vpop.permute.xlu0 %3788
      %3790 = vrot.lane.b32.xlu0 %v3767, 32
      %v3791 = vpop.permute.xlu0 %3790
      %vm3800 = vcmask 261120
      %v3801 = vsel %vm3800, %v3736, %v3777
      %v3802 = vsel %vm3800, %v3737, %v3779
      %v3803 = vsel %vm3800, %v3738, %v3781
      %v3804 = vsel %vm3800, %v3739, %v3783
      %v3805 = vsel %vm3800, %v3740, %v3785
      %v3806 = vsel %vm3800, %v3741, %v3787
      %v3807 = vsel %vm3800, %v3742, %v3789
      %v3808 = vsel %vm3800, %v3743, %v3791
      %vm3809 = vcmask 523264
      %3810 = vst.msk [vmem:[%s210] sm:$0xff] %vm3809, %v3801
      %3811 = vst.msk [vmem:[%s210 + $0x8] sm:$0xff] %vm3809, %v3802
      %3812 = vst.msk [vmem:[%s210 + $0x10] sm:$0xff] %vm3809, %v3803
      %3813 = vst.msk [vmem:[%s210 + $0x18] sm:$0xff] %vm3809, %v3804
      %3814 = vst.msk [vmem:[%s210 + $0x20] sm:$0xff] %vm3809, %v3805
      %3815 = vst.msk [vmem:[%s210 + $0x28] sm:$0xff] %vm3809, %v3806
      %3816 = vst.msk [vmem:[%s210 + $0x30] sm:$0xff] %vm3809, %v3807
      %3817 = vst.msk [vmem:[%s210 + $0x38] sm:$0xff] %vm3809, %v3808
      %s3818 = smul.u32 4, %s17
      %s3819 = smul.u32 2, %s18
      %p3820 = scmp.lt.s32.totalorder %s3818, 7
      %s3821 = scalar_select %p3820, %s3818, 7
      %p3822 = scmp.lt.s32.totalorder %s3819, 1
      %s3823 = scalar_select %p3822, %s3819, 1
      %s3824 = smul.addr %s3821, 2
      %s3825 = sadd.s32 %s3823, %s3824
      %s3826 = smul.addr %s3825, 8
      %s3827 = scalar_lea.vmem %s2, %s3826
      // Predicated region
      $region29: #{unpool.1} parent=27 // pred_check
        %p3828 = pneg %p99
      $region30: #{unpool.1} parent=27 // pred_check_branch
        %3830 = sbr.rel (%p3828) target = $region32
      $region31: #{unpool.1} parent=27 // pred_region
        %s3831 = smul.u32 4, %s17
        %s3832 = smul.u32 2, %s18
      $region32: #{unpool.1} parent=27 // pred_fallthru
        _
    $region28: #{unpool.1} parent=5 // pred_fallthru
      _
    %p3833 = scmp.le.s32.totalorder 2, %s8
    // Predicated region
    $region33: #{unpool.1} parent=5 // pred_check
      %p3834 = pneg %p3833
    $region34: #{unpool.1} parent=5 // pred_check_branch
      %3836 = sbr.rel (%p3834) target = $region36
    $region35: #{unpool.1} parent=5 // pred_region
      %s3837 = ssub.s32 %s8, 2
      // Predicated region
      $region37: #{unpool.1} parent=35 // pred_check
        %p3838 = pneg %p105
      $region38: #{unpool.1} parent=35 // pred_check_branch
        %3840 = sbr.rel (%p3838) target = $region40
      $region39: #{unpool.1} parent=35 // pred_region
        %s3841 = smul.u32 4, %s19
        %s3842 = smul.u32 2, %s20
        %p3843 = scmp.lt.s32.totalorder %s3841, 7
        %s3844 = scalar_select %p3843, %s3841, 7
        %p3845 = scmp.lt.s32.totalorder %s3842, 1
        %s3846 = scalar_select %p3845, %s3842, 1
        %s3847 = smul.addr %s3844, 2
        %s3848 = sadd.s32 %s3846, %s3847
        %s3849 = smul.addr %s3848, 8
        %s3850 = scalar_lea.vmem %s2, %s3849
      $region40: #{unpool.1} parent=35 // pred_fallthru
        _
    $region36: #{unpool.1} parent=5 // pred_fallthru
      _
  $region6: #{unpool.1} parent=0 // loop_footer
    %s12 = sadd.s32 1, %s8
  $region7: #{unpool.1} parent=0 // loop_footer_branch
    %7 = sbr.rel target = $region3
  $region8: #{unpool.1} parent=0 // loop_exit
    _

</llo_original>
